<compile_context>
chip_gen: v7x
topology: tpu7x:2x2x1
jax: 0.10.0
libtpu: 0.0.40
codegen_flags: <defaults>
</compile_context>

<pallas_src>
import functools

import jax
import jax.numpy as jnp
from jax.experimental import pallas as pl
from jax.experimental.pallas import tpu as pltpu


def _prob_dtype(value_dtype):
    # bf16 exp roughly doubles EUP throughput on v6e/v7x; on v5e (no bf16
    # EUP/VPU) the compiler falls back to f32, so this is at worst neutral.
    return jnp.bfloat16 if value_dtype == jnp.bfloat16 else jnp.float32


def _flash_attn_kernel_folded(q_ref, k_ref, v_ref, o_ref,
                              q_sc, m_sc, l_sc, acc_sc, *,
                              num_heads, head_dim, softmax_temp):
    """Head-folded path (head_dim < 128): one (batch, q-tile) x KV-tile step.

    q_ref/k_ref/v_ref/o_ref: [1, tile, H*D]  (q/o revisited across the KV axis)
    q_sc:   [H, tq, D]  input dtype — q staged head-major once per q-tile
    m_sc:   [H, tq, 1]  f32 running row max
    l_sc:   [H, tq, 1]  f32 running softmax denominator
    acc_sc: [H, tq, D]  f32 running unnormalized P @ V (head-major => every
                        per-step update is a full-block, lane-offset-0 store)
    """
    kv_idx = pl.program_id(2)

    @pl.when(kv_idx == 0)
    def _init():
        m_sc[...] = jnp.full_like(m_sc, -jnp.inf)
        l_sc[...] = jnp.zeros_like(l_sc)
        acc_sc[...] = jnp.zeros_like(acc_sc)
        # Stage q head-major once per q-tile (the q block is revisited, not
        # re-DMA'd, across the KV grid axis).
        for h in range(num_heads):
            q_sc[h] = q_ref[0, :, h * head_dim:(h + 1) * head_dim]

    p_dtype = _prob_dtype(v_ref.dtype)

    for h in range(num_heads):                       # static unroll over heads
        lo = h * head_dim
        hi = lo + head_dim
        k_h = k_ref[0, :, lo:hi]                     # [tk, D]
        v_h = v_ref[0, :, lo:hi]                     # [tk, D]

        # scores[l, s] = sum_d q[l, d] * k[s, d] (no k.T materialized), f32
        # MXU accumulation; scale applied in f32, exactly like the reference.
        s_h = jax.lax.dot_general(
            q_sc[h], k_h,
            dimension_numbers=(((1,), (1,)), ((), ())),
            preferred_element_type=jnp.float32) * softmax_temp  # [tq, tk] f32

        m_prev = m_sc[h]                                            # [tq, 1]
        m_new = jnp.maximum(m_prev, jnp.max(s_h, axis=-1, keepdims=True))
        alpha = jnp.exp(m_prev - m_new)                 # rescale old state
        p = jnp.exp((s_h - m_new).astype(p_dtype))      # [tq, tk] (bf16 on bf16)

        l_sc[h] = alpha * l_sc[h] + jnp.sum(p, axis=-1, keepdims=True,
                                            dtype=jnp.float32)
        m_sc[h] = m_new

        pv = jnp.dot(p, v_h, preferred_element_type=jnp.float32)   # [tq, D] f32
        acc_sc[h] = alpha * acc_sc[h] + pv                          # full block

    @pl.when(kv_idx == pl.num_programs(2) - 1)
    def _finalize():
        # Normalize once after all PV accumulation (O(L*D) multiplies, EUP
        # reciprocal); heads hit the lane-dense output slab once per q-tile.
        approx = o_ref.dtype != jnp.float32
        for h in range(num_heads):
            lo = h * head_dim
            hi = lo + head_dim
            inv = pl.reciprocal(l_sc[h], approx=approx)             # [tq, 1]
            o_ref[0, :, lo:hi] = (acc_sc[h] * inv).astype(o_ref.dtype)


def _flash_attn_kernel_perhead(q_ref, k_ref, v_ref, o_ref,
                               m_sc, l_sc, acc_sc, *, softmax_temp):
    """Per-head path (head_dim % 128 == 0): heads live on a parallel grid axis.

    q_ref/o_ref: [1, tq, D]    k_ref/v_ref: [1, tk, D]
    m_sc/l_sc:   [tq, 1]  f32  acc_sc: [tq, D]  f32
    """
    kv_idx = pl.program_id(3)

    @pl.when(kv_idx == 0)
    def _init():
        m_sc[...] = jnp.full_like(m_sc, -jnp.inf)
        l_sc[...] = jnp.zeros_like(l_sc)
        acc_sc[...] = jnp.zeros_like(acc_sc)

    q = q_ref[0]                                      # [tq, D]
    k = k_ref[0]                                      # [tk, D]
    v = v_ref[0]                                      # [tk, D]

    s = jax.lax.dot_general(
        q, k, dimension_numbers=(((1,), (1,)), ((), ())),
        preferred_element_type=jnp.float32) * softmax_temp         # [tq, tk]

    m_prev = m_sc[...]
    m_new = jnp.maximum(m_prev, jnp.max(s, axis=-1, keepdims=True))
    alpha = jnp.exp(m_prev - m_new)
    p = jnp.exp((s - m_new).astype(_prob_dtype(v_ref.dtype)))

    l_sc[...] = alpha * l_sc[...] + jnp.sum(p, axis=-1, keepdims=True,
                                            dtype=jnp.float32)
    m_sc[...] = m_new
    acc_sc[...] = alpha * acc_sc[...] + jnp.dot(
        p, v, preferred_element_type=jnp.float32)

    @pl.when(kv_idx == pl.num_programs(3) - 1)
    def _finalize():
        approx = o_ref.dtype != jnp.float32
        inv = pl.reciprocal(l_sc[...], approx=approx)
        o_ref[0] = (acc_sc[...] * inv).astype(o_ref.dtype)


def _sublane_min(dtype):
    """Minimum second-to-last block dim per dtype (f32:8, bf16:16, int8:32)."""
    return {4: 8, 2: 16, 1: 32}.get(jnp.dtype(dtype).itemsize, 8)


def _pick_tile(dim, max_tile, min_tile):
    """Largest tile <= max_tile dividing `dim` that is a multiple of the
    dtype-dependent sublane minimum, or the full (small) extent."""
    if dim <= max_tile:
        return dim
    for t in range(max_tile, min_tile - 1, -1):
        if dim % t == 0 and t % min_tile == 0:
            return t
    # TODO(synk): cdiv-based tiling + in-kernel tail masking for lengths with
    #             no friendly divisor; for now fall back to a single block.
    return dim


def full_attention(queries, keys, values, q_mask=None, kv_mask=None, *,
                   q_tile=None, kv_tile=None):
    """queries: [N, L, H, D], keys/values: [N, S, H, D] -> [N, L, H, D]."""
    # TODO(synk): q_mask / kv_mask (-inf masked_fill) and use_dropout=True
    #             attention dropout are not implemented in-kernel.
    assert q_mask is None and kv_mask is None, "masking not implemented"
    N, L, H, D = queries.shape
    S = keys.shape[1]
    assert keys.shape == (N, S, H, D) and values.shape == (N, S, H, D)
    HD = H * D
    itemsize = jnp.dtype(queries.dtype).itemsize
    min_sub = max(_sublane_min(queries.dtype), _sublane_min(values.dtype))

    # Free metadata reshape (last two dims contiguous): no HBM transposes, and
    # every DMA / the final store is lane-dense over the last axis.
    q = queries.reshape(N, L, HD)
    k = keys.reshape(N, S, HD)
    v = values.reshape(N, S, HD)

    # KV tile capped at 128 so the [tq, tk] f32 score tile stays well inside
    # the 64-vreg register file (a 256x256 f32 tile is the whole file).
    tq = q_tile if q_tile is not None else _pick_tile(L, 256, min_sub)
    tk = kv_tile if kv_tile is not None else _pick_tile(S, 128, min_sub)
    assert L % tq == 0 and S % tk == 0, (L, tq, S, tk)

    softmax_temp = 1.0 / (float(D) ** 0.5)
    per_head = (D % 128 == 0)

    cost = pl.CostEstimate(
        flops=4 * N * H * L * S * D,
        transcendentals=N * H * L * S,
        bytes_accessed=(2 * N * L * HD + 2 * N * S * HD) * itemsize,
    )

    if per_head:
        # Heads on a parallel grid axis: no static head unroll, per-head
        # scratch, lane-dense (multiple-of-128) blocks, extra parallel extent
        # for megacore / v7x dual TensorCore sharding.
        grid = (N, H, L // tq, S // tk)
        io_bytes = (2 * tq * D + 2 * tk * D) * itemsize            # q, o, k, v
        scratch_bytes = (tq * D + 2 * tq * 128) * 4                # acc, m, l
        kernel = functools.partial(_flash_attn_kernel_perhead,
                                   softmax_temp=softmax_temp)
        grid_spec = pltpu.PrefetchScalarGridSpec(
            num_scalar_prefetch=0,
            grid=grid,
            in_specs=[
                pl.BlockSpec((1, tq, D), lambda n, h, lq, s: (n, lq, h)),
                pl.BlockSpec((1, tk, D), lambda n, h, lq, s: (n, s, h)),
                pl.BlockSpec((1, tk, D), lambda n, h, lq, s: (n, s, h)),
            ],
            out_specs=pl.BlockSpec((1, tq, D), lambda n, h, lq, s: (n, lq, h)),
            scratch_shapes=[
                pltpu.VMEM((tq, 1), jnp.float32),     # running max m
                pltpu.VMEM((tq, 1), jnp.float32),     # running denom l
                pltpu.VMEM((tq, D), jnp.float32),     # unnormalized P @ V
            ],
        )
        dim_sem = ("parallel", "parallel", "parallel", "arbitrary")
    else:
        # Lane-folded path (D < 128) with head-major f32 scratch so the hot
        # accumulator update is a full-block store (no per-step masked RMW).
        if q_tile is None:
            # Keep >= 2 programs on the parallel axes (feeds v7x's two TCs).
            while (N * (L // tq) < 2 and tq % 2 == 0
                   and (tq // 2) % min_sub == 0 and L % (tq // 2) == 0):
                tq //= 2
        grid = (N, L // tq, S // tk)
        io_bytes = (2 * tq * HD + 2 * tk * HD) * itemsize          # q, o, k, v
        scratch_bytes = (H * tq * D * (itemsize + 4)               # q_sc, acc
                         + 2 * H * tq * 128 * 4)                   # m, l (padded)
        kernel = functools.partial(_flash_attn_kernel_folded,
                                   num_heads=H, head_dim=D,
                                   softmax_temp=softmax_temp)
        grid_spec = pltpu.PrefetchScalarGridSpec(
            num_scalar_prefetch=0,
            grid=grid,
            in_specs=[
                pl.BlockSpec((1, tq, HD), lambda n, lq, s: (n, lq, 0)),
                pl.BlockSpec((1, tk, HD), lambda n, lq, s: (n, s, 0)),
                pl.BlockSpec((1, tk, HD), lambda n, lq, s: (n, s, 0)),
            ],
            out_specs=pl.BlockSpec((1, tq, HD), lambda n, lq, s: (n, lq, 0)),
            scratch_shapes=[
                pltpu.VMEM((H, tq, D), queries.dtype),  # staged q (head-major)
                pltpu.VMEM((H, tq, 1), jnp.float32),    # running max m
                pltpu.VMEM((H, tq, 1), jnp.float32),    # running denom l
                pltpu.VMEM((H, tq, D), jnp.float32),    # unnormalized P @ V
            ],
        )
        dim_sem = ("parallel", "parallel", "arbitrary")

    # 2-deep pipelining of I/O blocks + scratch with headroom, clamped to
    # <= 32 MiB so v7x (64 MiB physical, 32 MiB default scoped VMEM) is safe.
    need = 2 * io_bytes + scratch_bytes
    vmem_limit = int(min(max(2 * need, 16 * 1024 * 1024), 32 * 1024 * 1024))

    out = pl.pallas_call(
        kernel,
        out_shape=jax.ShapeDtypeStruct((N, L, HD), queries.dtype),
        grid_spec=grid_spec,
        compiler_params=pltpu.CompilerParams(
            dimension_semantics=dim_sem,
            vmem_limit_bytes=vmem_limit,
        ),
        cost_estimate=cost,
    )(q, k, v)

    return out.reshape(N, L, H, D)


def _reference(queries, keys, values):
    """Pure-JAX reference mirroring the PyTorch forward exactly (f32)."""
    D = queries.shape[3]
    qk = jnp.einsum('nlhd,nshd->nlsh', queries, keys,
                    precision=jax.lax.Precision.HIGHEST)
    a = jax.nn.softmax(qk / jnp.sqrt(jnp.float32(D)), axis=2)
    return jnp.einsum('nlsh,nshd->nlhd', a, values,
                      precision=jax.lax.Precision.HIGHEST)


if __name__ == "__main__":
    key = jax.random.PRNGKey(0)

    # --- head-folded path (head_dim < 128) ---
    N, L, S, H, D = 2, 16, 16, 4, 32
    kq, kk, kv = jax.random.split(key, 3)
    queries = jax.random.normal(kq, (N, L, H, D), dtype=jnp.float32)
    keys_ = jax.random.normal(kk, (N, S, H, D), dtype=jnp.float32)
    values = jax.random.normal(kv, (N, S, H, D), dtype=jnp.float32)
    ref = _reference(queries, keys_, values)

    out = jax.block_until_ready(full_attention(queries, keys_, values))
    assert out.shape == (N, L, H, D), out.shape
    assert jnp.allclose(out, ref, atol=3e-5, rtol=3e-5), \
        float(jnp.max(jnp.abs(out - ref)))

    # Forced small tiles -> multi-step online-softmax accumulation across the
    # "arbitrary" KV grid axis.
    out_tiled = jax.block_until_ready(
        full_attention(queries, keys_, values, q_tile=8, kv_tile=8))
    assert jnp.allclose(out_tiled, ref, atol=3e-5, rtol=3e-5), \
        float(jnp.max(jnp.abs(out_tiled - ref)))

    # bf16 fast path (bf16 MXU + bf16 exp), looser tolerance.
    qb, kb, vb = (x.astype(jnp.bfloat16) for x in (queries, keys_, values))
    out_bf16 = jax.block_until_ready(full_attention(qb, kb, vb))
    ref_bf16 = _reference(qb.astype(jnp.float32), kb.astype(jnp.float32),
                          vb.astype(jnp.float32))
    assert jnp.allclose(out_bf16.astype(jnp.float32), ref_bf16,
                        atol=5e-2, rtol=5e-2)

    # --- per-head grid path (head_dim == 128), multi KV step ---
    N2, L2, S2, H2, D2 = 1, 32, 32, 2, 128
    kq2, kk2, kv2 = jax.random.split(jax.random.PRNGKey(1), 3)
    q2 = jax.random.normal(kq2, (N2, L2, H2, D2), dtype=jnp.float32)
    k2 = jax.random.normal(kk2, (N2, S2, H2, D2), dtype=jnp.float32)
    v2 = jax.random.normal(kv2, (N2, S2, H2, D2), dtype=jnp.float32)
    ref2 = _reference(q2, k2, v2)
    out2 = jax.block_until_ready(
        full_attention(q2, k2, v2, q_tile=16, kv_tile=16))
    assert out2.shape == (N2, L2, H2, D2), out2.shape
    assert jnp.allclose(out2, ref2, atol=1e-4, rtol=1e-4), \
        float(jnp.max(jnp.abs(out2 - ref2)))

    print("KERNEL_OK")
</pallas_src>

<mosaic_0001>
module attributes {stable_mosaic.version = 11 : i64} {
  func.func @_flash_attn_kernel_folded(%arg0: i32, %arg1: i32, %arg2: i32, %arg3: memref<1x16x128xf32, #tpu.memory_space<vmem>>, %arg4: memref<1x16x128xf32, #tpu.memory_space<vmem>>, %arg5: memref<1x16x128xf32, #tpu.memory_space<vmem>>, %arg6: memref<1x16x128xf32, #tpu.memory_space<vmem>>, %arg7: memref<4x16x32xf32, #tpu.memory_space<vmem>>, %arg8: memref<4x16x1xf32, #tpu.memory_space<vmem>>, %arg9: memref<4x16x1xf32, #tpu.memory_space<vmem>>, %arg10: memref<4x16x32xf32, #tpu.memory_space<vmem>>) attributes {dimension_semantics = [#tpu.dimension_semantics<parallel>, #tpu.dimension_semantics<parallel>, #tpu.dimension_semantics<arbitrary>], iteration_bounds = array<i64: 2, 1, 1>, scalar_prefetch = 0 : i64, scratch_operands = 4 : i64, tpu.core_type = #tpu.core_type<tc>, window_params = [{transform_indices = @transform_0, window_bounds = array<i64: 1, 16, 128>}, {transform_indices = @transform_1, window_bounds = array<i64: 1, 16, 128>}, {transform_indices = @transform_2, window_bounds = array<i64: 1, 16, 128>}, {transform_indices = @transform_3, window_bounds = array<i64: 1, 16, 128>}]} {
    %c0_i32 = arith.constant 0 : i32
    %0 = arith.cmpi eq, %arg2, %c0_i32 : i32
    %1 = arith.extui %0 : i1 to i32
    %c0_i32_0 = arith.constant 0 : i32
    %2 = arith.cmpi ne, %1, %c0_i32_0 : i32
    scf.if %2 {
      %cst_123 = arith.constant 0xFF800000 : f32
      %166 = vector.broadcast %cst_123 : f32 to vector<4x16x1xf32>
      %c0_124 = arith.constant 0 : index
      %c0_125 = arith.constant 0 : index
      %c0_126 = arith.constant 0 : index
      %167 = vector.load %arg8[%c0_124, %c0_125, %c0_126] : memref<4x16x1xf32, #tpu.memory_space<vmem>>, vector<4x16x1xf32>
      tpu.vector_store %arg8[%c0_124, %c0_125, %c0_126], %166 {strides = array<i32>} : memref<4x16x1xf32, #tpu.memory_space<vmem>>, vector<4x16x1xf32>,
      %cst_127 = arith.constant 0.000000e+00 : f32
      %168 = vector.broadcast %cst_127 : f32 to vector<4x16x1xf32>
      %c0_128 = arith.constant 0 : index
      %c0_129 = arith.constant 0 : index
      %c0_130 = arith.constant 0 : index
      %169 = vector.load %arg9[%c0_128, %c0_129, %c0_130] : memref<4x16x1xf32, #tpu.memory_space<vmem>>, vector<4x16x1xf32>
      tpu.vector_store %arg9[%c0_128, %c0_129, %c0_130], %168 {strides = array<i32>} : memref<4x16x1xf32, #tpu.memory_space<vmem>>, vector<4x16x1xf32>,
      %cst_131 = arith.constant 0.000000e+00 : f32
      %170 = vector.broadcast %cst_131 : f32 to vector<4x16x32xf32>
      %c0_132 = arith.constant 0 : index
      %c0_133 = arith.constant 0 : index
      %c0_134 = arith.constant 0 : index
      %171 = vector.load %arg10[%c0_132, %c0_133, %c0_134] : memref<4x16x32xf32, #tpu.memory_space<vmem>>, vector<4x16x32xf32>
      tpu.vector_store %arg10[%c0_132, %c0_133, %c0_134], %170 {strides = array<i32>} : memref<4x16x32xf32, #tpu.memory_space<vmem>>, vector<4x16x32xf32>,
      %c0_135 = arith.constant 0 : index
      %c0_136 = arith.constant 0 : index
      %c0_137 = arith.constant 0 : index
      %172 = vector.load %arg3[%c0_135, %c0_136, %c0_137] : memref<1x16x128xf32, #tpu.memory_space<vmem>>, vector<1x16x32xf32>
      %173 = vector.shape_cast %172 : vector<1x16x32xf32> to vector<16x32xf32>
      %c0_138 = arith.constant 0 : index
      %c0_139 = arith.constant 0 : index
      %c0_140 = arith.constant 0 : index
      %174 = vector.load %arg7[%c0_138, %c0_139, %c0_140] : memref<4x16x32xf32, #tpu.memory_space<vmem>>, vector<1x16x32xf32>
      %175 = vector.shape_cast %174 : vector<1x16x32xf32> to vector<16x32xf32>
      %176 = vector.shape_cast %173 : vector<16x32xf32> to vector<1x16x32xf32>
      tpu.vector_store %arg7[%c0_138, %c0_139, %c0_140], %176 {strides = array<i32>} : memref<4x16x32xf32, #tpu.memory_space<vmem>>, vector<1x16x32xf32>,
      %c0_141 = arith.constant 0 : index
      %c0_142 = arith.constant 0 : index
      %c32_143 = arith.constant 32 : index
      %177 = vector.load %arg3[%c0_141, %c0_142, %c32_143] : memref<1x16x128xf32, #tpu.memory_space<vmem>>, vector<1x16x32xf32>
      %178 = vector.shape_cast %177 : vector<1x16x32xf32> to vector<16x32xf32>
      %c1_144 = arith.constant 1 : index
      %c0_145 = arith.constant 0 : index
      %c0_146 = arith.constant 0 : index
      %179 = vector.load %arg7[%c1_144, %c0_145, %c0_146] : memref<4x16x32xf32, #tpu.memory_space<vmem>>, vector<1x16x32xf32>
      %180 = vector.shape_cast %179 : vector<1x16x32xf32> to vector<16x32xf32>
      %181 = vector.shape_cast %178 : vector<16x32xf32> to vector<1x16x32xf32>
      tpu.vector_store %arg7[%c1_144, %c0_145, %c0_146], %181 {strides = array<i32>} : memref<4x16x32xf32, #tpu.memory_space<vmem>>, vector<1x16x32xf32>,
      %c0_147 = arith.constant 0 : index
      %c0_148 = arith.constant 0 : index
      %c64_149 = arith.constant 64 : index
      %182 = vector.load %arg3[%c0_147, %c0_148, %c64_149] : memref<1x16x128xf32, #tpu.memory_space<vmem>>, vector<1x16x32xf32>
      %183 = vector.shape_cast %182 : vector<1x16x32xf32> to vector<16x32xf32>
      %c2_150 = arith.constant 2 : index
      %c0_151 = arith.constant 0 : index
      %c0_152 = arith.constant 0 : index
      %184 = vector.load %arg7[%c2_150, %c0_151, %c0_152] : memref<4x16x32xf32, #tpu.memory_space<vmem>>, vector<1x16x32xf32>
      %185 = vector.shape_cast %184 : vector<1x16x32xf32> to vector<16x32xf32>
      %186 = vector.shape_cast %183 : vector<16x32xf32> to vector<1x16x32xf32>
      tpu.vector_store %arg7[%c2_150, %c0_151, %c0_152], %186 {strides = array<i32>} : memref<4x16x32xf32, #tpu.memory_space<vmem>>, vector<1x16x32xf32>,
      %c0_153 = arith.constant 0 : index
      %c0_154 = arith.constant 0 : index
      %c96_155 = arith.constant 96 : index
      %187 = vector.load %arg3[%c0_153, %c0_154, %c96_155] : memref<1x16x128xf32, #tpu.memory_space<vmem>>, vector<1x16x32xf32>
      %188 = vector.shape_cast %187 : vector<1x16x32xf32> to vector<16x32xf32>
      %c3_156 = arith.constant 3 : index
      %c0_157 = arith.constant 0 : index
      %c0_158 = arith.constant 0 : index
      %189 = vector.load %arg7[%c3_156, %c0_157, %c0_158] : memref<4x16x32xf32, #tpu.memory_space<vmem>>, vector<1x16x32xf32>
      %190 = vector.shape_cast %189 : vector<1x16x32xf32> to vector<16x32xf32>
      %191 = vector.shape_cast %188 : vector<16x32xf32> to vector<1x16x32xf32>
      tpu.vector_store %arg7[%c3_156, %c0_157, %c0_158], %191 {strides = array<i32>} : memref<4x16x32xf32, #tpu.memory_space<vmem>>, vector<1x16x32xf32>,
    } else {
    }
    %c0 = arith.constant 0 : index
    %c0_1 = arith.constant 0 : index
    %c0_2 = arith.constant 0 : index
    %3 = vector.load %arg4[%c0, %c0_1, %c0_2] : memref<1x16x128xf32, #tpu.memory_space<vmem>>, vector<1x16x32xf32>
    %4 = vector.shape_cast %3 : vector<1x16x32xf32> to vector<16x32xf32>
    %c0_3 = arith.constant 0 : index
    %c0_4 = arith.constant 0 : index
    %c0_5 = arith.constant 0 : index
    %5 = vector.load %arg5[%c0_3, %c0_4, %c0_5] : memref<1x16x128xf32, #tpu.memory_space<vmem>>, vector<1x16x32xf32>
    %6 = vector.shape_cast %5 : vector<1x16x32xf32> to vector<16x32xf32>
    %c0_6 = arith.constant 0 : index
    %c0_7 = arith.constant 0 : index
    %c0_8 = arith.constant 0 : index
    %7 = vector.load %arg7[%c0_6, %c0_7, %c0_8] : memref<4x16x32xf32, #tpu.memory_space<vmem>>, vector<1x16x32xf32>
    %8 = vector.shape_cast %7 : vector<1x16x32xf32> to vector<16x32xf32>
    %cst = arith.constant dense<0.000000e+00> : vector<16x16xf32>
    %9 = tpu.matmul %8, %4, %cst {dimension_numbers = #tpu.dot_dimension_numbers<[1], [1], [0], [0], [0, 0, 1, 0], [], []>} : vector<16x32xf32>, vector<16x32xf32>, vector<16x16xf32> -> vector<16x16xf32>
    %cst_9 = arith.constant 0.176776692 : f32
    %10 = vector.broadcast %cst_9 : f32 to vector<16x16xf32>
    %11 = arith.mulf %9, %10 : vector<16x16xf32>
    %c0_10 = arith.constant 0 : index
    %c0_11 = arith.constant 0 : index
    %c0_12 = arith.constant 0 : index
    %12 = vector.load %arg8[%c0_10, %c0_11, %c0_12] : memref<4x16x1xf32, #tpu.memory_space<vmem>>, vector<1x16x1xf32>
    %13 = vector.shape_cast %12 : vector<1x16x1xf32> to vector<16x1xf32>
    %cst_13 = arith.constant dense<0xFF800000> : vector<16xf32>
    %14 = vector.multi_reduction <maximumf>, %11, %cst_13 [1] : vector<16x16xf32> to vector<16xf32>
    %15 = vector.shape_cast %14 : vector<16xf32> to vector<16x1xf32>
    %16 = arith.maximumf %13, %15 : vector<16x1xf32>
    %17 = arith.subf %13, %16 : vector<16x1xf32>
    %18 = math.exp %17 : vector<16x1xf32>
    %19 = vector.broadcast %16 : vector<16x1xf32> to vector<16x16xf32>
    %20 = arith.subf %11, %19 : vector<16x16xf32>
    %21 = math.exp %20 : vector<16x16xf32>
    %c0_14 = arith.constant 0 : index
    %c0_15 = arith.constant 0 : index
    %c0_16 = arith.constant 0 : index
    %22 = vector.load %arg9[%c0_14, %c0_15, %c0_16] : memref<4x16x1xf32, #tpu.memory_space<vmem>>, vector<1x16x1xf32>
    %23 = vector.shape_cast %22 : vector<1x16x1xf32> to vector<16x1xf32>
    %24 = arith.mulf %18, %23 : vector<16x1xf32>
    %cst_17 = arith.constant dense<0.000000e+00> : vector<16xf32>
    %25 = vector.multi_reduction <add>, %21, %cst_17 [1] : vector<16x16xf32> to vector<16xf32>
    %26 = vector.shape_cast %25 : vector<16xf32> to vector<16x1xf32>
    %27 = arith.addf %24, %26 : vector<16x1xf32>
    %c0_18 = arith.constant 0 : index
    %c0_19 = arith.constant 0 : index
    %c0_20 = arith.constant 0 : index
    %28 = vector.load %arg9[%c0_18, %c0_19, %c0_20] : memref<4x16x1xf32, #tpu.memory_space<vmem>>, vector<1x16x1xf32>
    %29 = vector.shape_cast %28 : vector<1x16x1xf32> to vector<16x1xf32>
    %30 = vector.shape_cast %27 : vector<16x1xf32> to vector<1x16x1xf32>
    tpu.vector_store %arg9[%c0_18, %c0_19, %c0_20], %30 {strides = array<i32>} : memref<4x16x1xf32, #tpu.memory_space<vmem>>, vector<1x16x1xf32>,
    %c0_21 = arith.constant 0 : index
    %c0_22 = arith.constant 0 : index
    %c0_23 = arith.constant 0 : index
    %31 = vector.load %arg8[%c0_21, %c0_22, %c0_23] : memref<4x16x1xf32, #tpu.memory_space<vmem>>, vector<1x16x1xf32>
    %32 = vector.shape_cast %31 : vector<1x16x1xf32> to vector<16x1xf32>
    %33 = vector.shape_cast %16 : vector<16x1xf32> to vector<1x16x1xf32>
    tpu.vector_store %arg8[%c0_21, %c0_22, %c0_23], %33 {strides = array<i32>} : memref<4x16x1xf32, #tpu.memory_space<vmem>>, vector<1x16x1xf32>,
    %cst_24 = arith.constant dense<0.000000e+00> : vector<16x32xf32>
    %34 = tpu.matmul %21, %6, %cst_24 {dimension_numbers = #tpu.dot_dimension_numbers<[1], [0], [0], [1], [0, 0, 1, 1], [], []>} : vector<16x16xf32>, vector<16x32xf32>, vector<16x32xf32> -> vector<16x32xf32>
    %c0_25 = arith.constant 0 : index
    %c0_26 = arith.constant 0 : index
    %c0_27 = arith.constant 0 : index
    %35 = vector.load %arg10[%c0_25, %c0_26, %c0_27] : memref<4x16x32xf32, #tpu.memory_space<vmem>>, vector<1x16x32xf32>
    %36 = vector.shape_cast %35 : vector<1x16x32xf32> to vector<16x32xf32>
    %37 = vector.broadcast %18 : vector<16x1xf32> to vector<16x32xf32>
    %38 = arith.mulf %37, %36 : vector<16x32xf32>
    %39 = arith.addf %38, %34 : vector<16x32xf32>
    %c0_28 = arith.constant 0 : index
    %c0_29 = arith.constant 0 : index
    %c0_30 = arith.constant 0 : index
    %40 = vector.load %arg10[%c0_28, %c0_29, %c0_30] : memref<4x16x32xf32, #tpu.memory_space<vmem>>, vector<1x16x32xf32>
    %41 = vector.shape_cast %40 : vector<1x16x32xf32> to vector<16x32xf32>
    %42 = vector.shape_cast %39 : vector<16x32xf32> to vector<1x16x32xf32>
    tpu.vector_store %arg10[%c0_28, %c0_29, %c0_30], %42 {strides = array<i32>} : memref<4x16x32xf32, #tpu.memory_space<vmem>>, vector<1x16x32xf32>,
    %c0_31 = arith.constant 0 : index
    %c0_32 = arith.constant 0 : index
    %c32 = arith.constant 32 : index
    %43 = vector.load %arg4[%c0_31, %c0_32, %c32] : memref<1x16x128xf32, #tpu.memory_space<vmem>>, vector<1x16x32xf32>
    %44 = vector.shape_cast %43 : vector<1x16x32xf32> to vector<16x32xf32>
    %c0_33 = arith.constant 0 : index
    %c0_34 = arith.constant 0 : index
    %c32_35 = arith.constant 32 : index
    %45 = vector.load %arg5[%c0_33, %c0_34, %c32_35] : memref<1x16x128xf32, #tpu.memory_space<vmem>>, vector<1x16x32xf32>
    %46 = vector.shape_cast %45 : vector<1x16x32xf32> to vector<16x32xf32>
    %c1 = arith.constant 1 : index
    %c0_36 = arith.constant 0 : index
    %c0_37 = arith.constant 0 : index
    %47 = vector.load %arg7[%c1, %c0_36, %c0_37] : memref<4x16x32xf32, #tpu.memory_space<vmem>>, vector<1x16x32xf32>
    %48 = vector.shape_cast %47 : vector<1x16x32xf32> to vector<16x32xf32>
    %cst_38 = arith.constant dense<0.000000e+00> : vector<16x16xf32>
    %49 = tpu.matmul %48, %44, %cst_38 {dimension_numbers = #tpu.dot_dimension_numbers<[1], [1], [0], [0], [0, 0, 1, 0], [], []>} : vector<16x32xf32>, vector<16x32xf32>, vector<16x16xf32> -> vector<16x16xf32>
    %cst_39 = arith.constant 0.176776692 : f32
    %50 = vector.broadcast %cst_39 : f32 to vector<16x16xf32>
    %51 = arith.mulf %49, %50 : vector<16x16xf32>
    %c1_40 = arith.constant 1 : index
    %c0_41 = arith.constant 0 : index
    %c0_42 = arith.constant 0 : index
    %52 = vector.load %arg8[%c1_40, %c0_41, %c0_42] : memref<4x16x1xf32, #tpu.memory_space<vmem>>, vector<1x16x1xf32>
    %53 = vector.shape_cast %52 : vector<1x16x1xf32> to vector<16x1xf32>
    %cst_43 = arith.constant dense<0xFF800000> : vector<16xf32>
    %54 = vector.multi_reduction <maximumf>, %51, %cst_43 [1] : vector<16x16xf32> to vector<16xf32>
    %55 = vector.shape_cast %54 : vector<16xf32> to vector<16x1xf32>
    %56 = arith.maximumf %53, %55 : vector<16x1xf32>
    %57 = arith.subf %53, %56 : vector<16x1xf32>
    %58 = math.exp %57 : vector<16x1xf32>
    %59 = vector.broadcast %56 : vector<16x1xf32> to vector<16x16xf32>
    %60 = arith.subf %51, %59 : vector<16x16xf32>
    %61 = math.exp %60 : vector<16x16xf32>
    %c1_44 = arith.constant 1 : index
    %c0_45 = arith.constant 0 : index
    %c0_46 = arith.constant 0 : index
    %62 = vector.load %arg9[%c1_44, %c0_45, %c0_46] : memref<4x16x1xf32, #tpu.memory_space<vmem>>, vector<1x16x1xf32>
    %63 = vector.shape_cast %62 : vector<1x16x1xf32> to vector<16x1xf32>
    %64 = arith.mulf %58, %63 : vector<16x1xf32>
    %cst_47 = arith.constant dense<0.000000e+00> : vector<16xf32>
    %65 = vector.multi_reduction <add>, %61, %cst_47 [1] : vector<16x16xf32> to vector<16xf32>
    %66 = vector.shape_cast %65 : vector<16xf32> to vector<16x1xf32>
    %67 = arith.addf %64, %66 : vector<16x1xf32>
    %c1_48 = arith.constant 1 : index
    %c0_49 = arith.constant 0 : index
    %c0_50 = arith.constant 0 : index
    %68 = vector.load %arg9[%c1_48, %c0_49, %c0_50] : memref<4x16x1xf32, #tpu.memory_space<vmem>>, vector<1x16x1xf32>
    %69 = vector.shape_cast %68 : vector<1x16x1xf32> to vector<16x1xf32>
    %70 = vector.shape_cast %67 : vector<16x1xf32> to vector<1x16x1xf32>
    tpu.vector_store %arg9[%c1_48, %c0_49, %c0_50], %70 {strides = array<i32>} : memref<4x16x1xf32, #tpu.memory_space<vmem>>, vector<1x16x1xf32>,
    %c1_51 = arith.constant 1 : index
    %c0_52 = arith.constant 0 : index
    %c0_53 = arith.constant 0 : index
    %71 = vector.load %arg8[%c1_51, %c0_52, %c0_53] : memref<4x16x1xf32, #tpu.memory_space<vmem>>, vector<1x16x1xf32>
    %72 = vector.shape_cast %71 : vector<1x16x1xf32> to vector<16x1xf32>
    %73 = vector.shape_cast %56 : vector<16x1xf32> to vector<1x16x1xf32>
    tpu.vector_store %arg8[%c1_51, %c0_52, %c0_53], %73 {strides = array<i32>} : memref<4x16x1xf32, #tpu.memory_space<vmem>>, vector<1x16x1xf32>,
    %cst_54 = arith.constant dense<0.000000e+00> : vector<16x32xf32>
    %74 = tpu.matmul %61, %46, %cst_54 {dimension_numbers = #tpu.dot_dimension_numbers<[1], [0], [0], [1], [0, 0, 1, 1], [], []>} : vector<16x16xf32>, vector<16x32xf32>, vector<16x32xf32> -> vector<16x32xf32>
    %c1_55 = arith.constant 1 : index
    %c0_56 = arith.constant 0 : index
    %c0_57 = arith.constant 0 : index
    %75 = vector.load %arg10[%c1_55, %c0_56, %c0_57] : memref<4x16x32xf32, #tpu.memory_space<vmem>>, vector<1x16x32xf32>
    %76 = vector.shape_cast %75 : vector<1x16x32xf32> to vector<16x32xf32>
    %77 = vector.broadcast %58 : vector<16x1xf32> to vector<16x32xf32>
    %78 = arith.mulf %77, %76 : vector<16x32xf32>
    %79 = arith.addf %78, %74 : vector<16x32xf32>
    %c1_58 = arith.constant 1 : index
    %c0_59 = arith.constant 0 : index
    %c0_60 = arith.constant 0 : index
    %80 = vector.load %arg10[%c1_58, %c0_59, %c0_60] : memref<4x16x32xf32, #tpu.memory_space<vmem>>, vector<1x16x32xf32>
    %81 = vector.shape_cast %80 : vector<1x16x32xf32> to vector<16x32xf32>
    %82 = vector.shape_cast %79 : vector<16x32xf32> to vector<1x16x32xf32>
    tpu.vector_store %arg10[%c1_58, %c0_59, %c0_60], %82 {strides = array<i32>} : memref<4x16x32xf32, #tpu.memory_space<vmem>>, vector<1x16x32xf32>,
    %c0_61 = arith.constant 0 : index
    %c0_62 = arith.constant 0 : index
    %c64 = arith.constant 64 : index
    %83 = vector.load %arg4[%c0_61, %c0_62, %c64] : memref<1x16x128xf32, #tpu.memory_space<vmem>>, vector<1x16x32xf32>
    %84 = vector.shape_cast %83 : vector<1x16x32xf32> to vector<16x32xf32>
    %c0_63 = arith.constant 0 : index
    %c0_64 = arith.constant 0 : index
    %c64_65 = arith.constant 64 : index
    %85 = vector.load %arg5[%c0_63, %c0_64, %c64_65] : memref<1x16x128xf32, #tpu.memory_space<vmem>>, vector<1x16x32xf32>
    %86 = vector.shape_cast %85 : vector<1x16x32xf32> to vector<16x32xf32>
    %c2 = arith.constant 2 : index
    %c0_66 = arith.constant 0 : index
    %c0_67 = arith.constant 0 : index
    %87 = vector.load %arg7[%c2, %c0_66, %c0_67] : memref<4x16x32xf32, #tpu.memory_space<vmem>>, vector<1x16x32xf32>
    %88 = vector.shape_cast %87 : vector<1x16x32xf32> to vector<16x32xf32>
    %cst_68 = arith.constant dense<0.000000e+00> : vector<16x16xf32>
    %89 = tpu.matmul %88, %84, %cst_68 {dimension_numbers = #tpu.dot_dimension_numbers<[1], [1], [0], [0], [0, 0, 1, 0], [], []>} : vector<16x32xf32>, vector<16x32xf32>, vector<16x16xf32> -> vector<16x16xf32>
    %cst_69 = arith.constant 0.176776692 : f32
    %90 = vector.broadcast %cst_69 : f32 to vector<16x16xf32>
    %91 = arith.mulf %89, %90 : vector<16x16xf32>
    %c2_70 = arith.constant 2 : index
    %c0_71 = arith.constant 0 : index
    %c0_72 = arith.constant 0 : index
    %92 = vector.load %arg8[%c2_70, %c0_71, %c0_72] : memref<4x16x1xf32, #tpu.memory_space<vmem>>, vector<1x16x1xf32>
    %93 = vector.shape_cast %92 : vector<1x16x1xf32> to vector<16x1xf32>
    %cst_73 = arith.constant dense<0xFF800000> : vector<16xf32>
    %94 = vector.multi_reduction <maximumf>, %91, %cst_73 [1] : vector<16x16xf32> to vector<16xf32>
    %95 = vector.shape_cast %94 : vector<16xf32> to vector<16x1xf32>
    %96 = arith.maximumf %93, %95 : vector<16x1xf32>
    %97 = arith.subf %93, %96 : vector<16x1xf32>
    %98 = math.exp %97 : vector<16x1xf32>
    %99 = vector.broadcast %96 : vector<16x1xf32> to vector<16x16xf32>
    %100 = arith.subf %91, %99 : vector<16x16xf32>
    %101 = math.exp %100 : vector<16x16xf32>
    %c2_74 = arith.constant 2 : index
    %c0_75 = arith.constant 0 : index
    %c0_76 = arith.constant 0 : index
    %102 = vector.load %arg9[%c2_74, %c0_75, %c0_76] : memref<4x16x1xf32, #tpu.memory_space<vmem>>, vector<1x16x1xf32>
    %103 = vector.shape_cast %102 : vector<1x16x1xf32> to vector<16x1xf32>
    %104 = arith.mulf %98, %103 : vector<16x1xf32>
    %cst_77 = arith.constant dense<0.000000e+00> : vector<16xf32>
    %105 = vector.multi_reduction <add>, %101, %cst_77 [1] : vector<16x16xf32> to vector<16xf32>
    %106 = vector.shape_cast %105 : vector<16xf32> to vector<16x1xf32>
    %107 = arith.addf %104, %106 : vector<16x1xf32>
    %c2_78 = arith.constant 2 : index
    %c0_79 = arith.constant 0 : index
    %c0_80 = arith.constant 0 : index
    %108 = vector.load %arg9[%c2_78, %c0_79, %c0_80] : memref<4x16x1xf32, #tpu.memory_space<vmem>>, vector<1x16x1xf32>
    %109 = vector.shape_cast %108 : vector<1x16x1xf32> to vector<16x1xf32>
    %110 = vector.shape_cast %107 : vector<16x1xf32> to vector<1x16x1xf32>
    tpu.vector_store %arg9[%c2_78, %c0_79, %c0_80], %110 {strides = array<i32>} : memref<4x16x1xf32, #tpu.memory_space<vmem>>, vector<1x16x1xf32>,
    %c2_81 = arith.constant 2 : index
    %c0_82 = arith.constant 0 : index
    %c0_83 = arith.constant 0 : index
    %111 = vector.load %arg8[%c2_81, %c0_82, %c0_83] : memref<4x16x1xf32, #tpu.memory_space<vmem>>, vector<1x16x1xf32>
    %112 = vector.shape_cast %111 : vector<1x16x1xf32> to vector<16x1xf32>
    %113 = vector.shape_cast %96 : vector<16x1xf32> to vector<1x16x1xf32>
    tpu.vector_store %arg8[%c2_81, %c0_82, %c0_83], %113 {strides = array<i32>} : memref<4x16x1xf32, #tpu.memory_space<vmem>>, vector<1x16x1xf32>,
    %cst_84 = arith.constant dense<0.000000e+00> : vector<16x32xf32>
    %114 = tpu.matmul %101, %86, %cst_84 {dimension_numbers = #tpu.dot_dimension_numbers<[1], [0], [0], [1], [0, 0, 1, 1], [], []>} : vector<16x16xf32>, vector<16x32xf32>, vector<16x32xf32> -> vector<16x32xf32>
    %c2_85 = arith.constant 2 : index
    %c0_86 = arith.constant 0 : index
    %c0_87 = arith.constant 0 : index
    %115 = vector.load %arg10[%c2_85, %c0_86, %c0_87] : memref<4x16x32xf32, #tpu.memory_space<vmem>>, vector<1x16x32xf32>
    %116 = vector.shape_cast %115 : vector<1x16x32xf32> to vector<16x32xf32>
    %117 = vector.broadcast %98 : vector<16x1xf32> to vector<16x32xf32>
    %118 = arith.mulf %117, %116 : vector<16x32xf32>
    %119 = arith.addf %118, %114 : vector<16x32xf32>
    %c2_88 = arith.constant 2 : index
    %c0_89 = arith.constant 0 : index
    %c0_90 = arith.constant 0 : index
    %120 = vector.load %arg10[%c2_88, %c0_89, %c0_90] : memref<4x16x32xf32, #tpu.memory_space<vmem>>, vector<1x16x32xf32>
    %121 = vector.shape_cast %120 : vector<1x16x32xf32> to vector<16x32xf32>
    %122 = vector.shape_cast %119 : vector<16x32xf32> to vector<1x16x32xf32>
    tpu.vector_store %arg10[%c2_88, %c0_89, %c0_90], %122 {strides = array<i32>} : memref<4x16x32xf32, #tpu.memory_space<vmem>>, vector<1x16x32xf32>,
    %c0_91 = arith.constant 0 : index
    %c0_92 = arith.constant 0 : index
    %c96 = arith.constant 96 : index
    %123 = vector.load %arg4[%c0_91, %c0_92, %c96] : memref<1x16x128xf32, #tpu.memory_space<vmem>>, vector<1x16x32xf32>
    %124 = vector.shape_cast %123 : vector<1x16x32xf32> to vector<16x32xf32>
    %c0_93 = arith.constant 0 : index
    %c0_94 = arith.constant 0 : index
    %c96_95 = arith.constant 96 : index
    %125 = vector.load %arg5[%c0_93, %c0_94, %c96_95] : memref<1x16x128xf32, #tpu.memory_space<vmem>>, vector<1x16x32xf32>
    %126 = vector.shape_cast %125 : vector<1x16x32xf32> to vector<16x32xf32>
    %c3 = arith.constant 3 : index
    %c0_96 = arith.constant 0 : index
    %c0_97 = arith.constant 0 : index
    %127 = vector.load %arg7[%c3, %c0_96, %c0_97] : memref<4x16x32xf32, #tpu.memory_space<vmem>>, vector<1x16x32xf32>
    %128 = vector.shape_cast %127 : vector<1x16x32xf32> to vector<16x32xf32>
    %cst_98 = arith.constant dense<0.000000e+00> : vector<16x16xf32>
    %129 = tpu.matmul %128, %124, %cst_98 {dimension_numbers = #tpu.dot_dimension_numbers<[1], [1], [0], [0], [0, 0, 1, 0], [], []>} : vector<16x32xf32>, vector<16x32xf32>, vector<16x16xf32> -> vector<16x16xf32>
    %cst_99 = arith.constant 0.176776692 : f32
    %130 = vector.broadcast %cst_99 : f32 to vector<16x16xf32>
    %131 = arith.mulf %129, %130 : vector<16x16xf32>
    %c3_100 = arith.constant 3 : index
    %c0_101 = arith.constant 0 : index
    %c0_102 = arith.constant 0 : index
    %132 = vector.load %arg8[%c3_100, %c0_101, %c0_102] : memref<4x16x1xf32, #tpu.memory_space<vmem>>, vector<1x16x1xf32>
    %133 = vector.shape_cast %132 : vector<1x16x1xf32> to vector<16x1xf32>
    %cst_103 = arith.constant dense<0xFF800000> : vector<16xf32>
    %134 = vector.multi_reduction <maximumf>, %131, %cst_103 [1] : vector<16x16xf32> to vector<16xf32>
    %135 = vector.shape_cast %134 : vector<16xf32> to vector<16x1xf32>
    %136 = arith.maximumf %133, %135 : vector<16x1xf32>
    %137 = arith.subf %133, %136 : vector<16x1xf32>
    %138 = math.exp %137 : vector<16x1xf32>
    %139 = vector.broadcast %136 : vector<16x1xf32> to vector<16x16xf32>
    %140 = arith.subf %131, %139 : vector<16x16xf32>
    %141 = math.exp %140 : vector<16x16xf32>
    %c3_104 = arith.constant 3 : index
    %c0_105 = arith.constant 0 : index
    %c0_106 = arith.constant 0 : index
    %142 = vector.load %arg9[%c3_104, %c0_105, %c0_106] : memref<4x16x1xf32, #tpu.memory_space<vmem>>, vector<1x16x1xf32>
    %143 = vector.shape_cast %142 : vector<1x16x1xf32> to vector<16x1xf32>
    %144 = arith.mulf %138, %143 : vector<16x1xf32>
    %cst_107 = arith.constant dense<0.000000e+00> : vector<16xf32>
    %145 = vector.multi_reduction <add>, %141, %cst_107 [1] : vector<16x16xf32> to vector<16xf32>
    %146 = vector.shape_cast %145 : vector<16xf32> to vector<16x1xf32>
    %147 = arith.addf %144, %146 : vector<16x1xf32>
    %c3_108 = arith.constant 3 : index
    %c0_109 = arith.constant 0 : index
    %c0_110 = arith.constant 0 : index
    %148 = vector.load %arg9[%c3_108, %c0_109, %c0_110] : memref<4x16x1xf32, #tpu.memory_space<vmem>>, vector<1x16x1xf32>
    %149 = vector.shape_cast %148 : vector<1x16x1xf32> to vector<16x1xf32>
    %150 = vector.shape_cast %147 : vector<16x1xf32> to vector<1x16x1xf32>
    tpu.vector_store %arg9[%c3_108, %c0_109, %c0_110], %150 {strides = array<i32>} : memref<4x16x1xf32, #tpu.memory_space<vmem>>, vector<1x16x1xf32>,
    %c3_111 = arith.constant 3 : index
    %c0_112 = arith.constant 0 : index
    %c0_113 = arith.constant 0 : index
    %151 = vector.load %arg8[%c3_111, %c0_112, %c0_113] : memref<4x16x1xf32, #tpu.memory_space<vmem>>, vector<1x16x1xf32>
    %152 = vector.shape_cast %151 : vector<1x16x1xf32> to vector<16x1xf32>
    %153 = vector.shape_cast %136 : vector<16x1xf32> to vector<1x16x1xf32>
    tpu.vector_store %arg8[%c3_111, %c0_112, %c0_113], %153 {strides = array<i32>} : memref<4x16x1xf32, #tpu.memory_space<vmem>>, vector<1x16x1xf32>,
    %cst_114 = arith.constant dense<0.000000e+00> : vector<16x32xf32>
    %154 = tpu.matmul %141, %126, %cst_114 {dimension_numbers = #tpu.dot_dimension_numbers<[1], [0], [0], [1], [0, 0, 1, 1], [], []>} : vector<16x16xf32>, vector<16x32xf32>, vector<16x32xf32> -> vector<16x32xf32>
    %c3_115 = arith.constant 3 : index
    %c0_116 = arith.constant 0 : index
    %c0_117 = arith.constant 0 : index
    %155 = vector.load %arg10[%c3_115, %c0_116, %c0_117] : memref<4x16x32xf32, #tpu.memory_space<vmem>>, vector<1x16x32xf32>
    %156 = vector.shape_cast %155 : vector<1x16x32xf32> to vector<16x32xf32>
    %157 = vector.broadcast %138 : vector<16x1xf32> to vector<16x32xf32>
    %158 = arith.mulf %157, %156 : vector<16x32xf32>
    %159 = arith.addf %158, %154 : vector<16x32xf32>
    %c3_118 = arith.constant 3 : index
    %c0_119 = arith.constant 0 : index
    %c0_120 = arith.constant 0 : index
    %160 = vector.load %arg10[%c3_118, %c0_119, %c0_120] : memref<4x16x32xf32, #tpu.memory_space<vmem>>, vector<1x16x32xf32>
    %161 = vector.shape_cast %160 : vector<1x16x32xf32> to vector<16x32xf32>
    %162 = vector.shape_cast %159 : vector<16x32xf32> to vector<1x16x32xf32>
    tpu.vector_store %arg10[%c3_118, %c0_119, %c0_120], %162 {strides = array<i32>} : memref<4x16x32xf32, #tpu.memory_space<vmem>>, vector<1x16x32xf32>,
    %c0_i32_121 = arith.constant 0 : i32
    %163 = arith.cmpi eq, %arg2, %c0_i32_121 : i32
    %164 = arith.extui %163 : i1 to i32
    %c0_i32_122 = arith.constant 0 : i32
    %165 = arith.cmpi ne, %164, %c0_i32_122 : i32
    scf.if %165 {
      %c0_123 = arith.constant 0 : index
      %c0_124 = arith.constant 0 : index
      %c0_125 = arith.constant 0 : index
      %166 = vector.load %arg9[%c0_123, %c0_124, %c0_125] : memref<4x16x1xf32, #tpu.memory_space<vmem>>, vector<1x16x1xf32>
      %167 = vector.shape_cast %166 : vector<1x16x1xf32> to vector<16x1xf32>
      %168 = tpu.reciprocal %167 : vector<16x1xf32> -> vector<16x1xf32>
      %c0_126 = arith.constant 0 : index
      %c0_127 = arith.constant 0 : index
      %c0_128 = arith.constant 0 : index
      %169 = vector.load %arg10[%c0_126, %c0_127, %c0_128] : memref<4x16x32xf32, #tpu.memory_space<vmem>>, vector<1x16x32xf32>
      %170 = vector.shape_cast %169 : vector<1x16x32xf32> to vector<16x32xf32>
      %171 = vector.broadcast %168 : vector<16x1xf32> to vector<16x32xf32>
      %172 = arith.mulf %170, %171 : vector<16x32xf32>
      %c0_129 = arith.constant 0 : index
      %c0_130 = arith.constant 0 : index
      %c0_131 = arith.constant 0 : index
      %173 = vector.load %arg6[%c0_129, %c0_130, %c0_131] : memref<1x16x128xf32, #tpu.memory_space<vmem>>, vector<1x16x32xf32>
      %174 = vector.shape_cast %173 : vector<1x16x32xf32> to vector<16x32xf32>
      %175 = vector.shape_cast %172 : vector<16x32xf32> to vector<1x16x32xf32>
      tpu.vector_store %arg6[%c0_129, %c0_130, %c0_131], %175 {strides = array<i32>} : memref<1x16x128xf32, #tpu.memory_space<vmem>>, vector<1x16x32xf32>,
      %c1_132 = arith.constant 1 : index
      %c0_133 = arith.constant 0 : index
      %c0_134 = arith.constant 0 : index
      %176 = vector.load %arg9[%c1_132, %c0_133, %c0_134] : memref<4x16x1xf32, #tpu.memory_space<vmem>>, vector<1x16x1xf32>
      %177 = vector.shape_cast %176 : vector<1x16x1xf32> to vector<16x1xf32>
      %178 = tpu.reciprocal %177 : vector<16x1xf32> -> vector<16x1xf32>
      %c1_135 = arith.constant 1 : index
      %c0_136 = arith.constant 0 : index
      %c0_137 = arith.constant 0 : index
      %179 = vector.load %arg10[%c1_135, %c0_136, %c0_137] : memref<4x16x32xf32, #tpu.memory_space<vmem>>, vector<1x16x32xf32>
      %180 = vector.shape_cast %179 : vector<1x16x32xf32> to vector<16x32xf32>
      %181 = vector.broadcast %178 : vector<16x1xf32> to vector<16x32xf32>
      %182 = arith.mulf %180, %181 : vector<16x32xf32>
      %c0_138 = arith.constant 0 : index
      %c0_139 = arith.constant 0 : index
      %c32_140 = arith.constant 32 : index
      %183 = vector.load %arg6[%c0_138, %c0_139, %c32_140] : memref<1x16x128xf32, #tpu.memory_space<vmem>>, vector<1x16x32xf32>
      %184 = vector.shape_cast %183 : vector<1x16x32xf32> to vector<16x32xf32>
      %185 = vector.shape_cast %182 : vector<16x32xf32> to vector<1x16x32xf32>
      tpu.vector_store %arg6[%c0_138, %c0_139, %c32_140], %185 {strides = array<i32>} : memref<1x16x128xf32, #tpu.memory_space<vmem>>, vector<1x16x32xf32>,
      %c2_141 = arith.constant 2 : index
      %c0_142 = arith.constant 0 : index
      %c0_143 = arith.constant 0 : index
      %186 = vector.load %arg9[%c2_141, %c0_142, %c0_143] : memref<4x16x1xf32, #tpu.memory_space<vmem>>, vector<1x16x1xf32>
      %187 = vector.shape_cast %186 : vector<1x16x1xf32> to vector<16x1xf32>
      %188 = tpu.reciprocal %187 : vector<16x1xf32> -> vector<16x1xf32>
      %c2_144 = arith.constant 2 : index
      %c0_145 = arith.constant 0 : index
      %c0_146 = arith.constant 0 : index
      %189 = vector.load %arg10[%c2_144, %c0_145, %c0_146] : memref<4x16x32xf32, #tpu.memory_space<vmem>>, vector<1x16x32xf32>
      %190 = vector.shape_cast %189 : vector<1x16x32xf32> to vector<16x32xf32>
      %191 = vector.broadcast %188 : vector<16x1xf32> to vector<16x32xf32>
      %192 = arith.mulf %190, %191 : vector<16x32xf32>
      %c0_147 = arith.constant 0 : index
      %c0_148 = arith.constant 0 : index
      %c64_149 = arith.constant 64 : index
      %193 = vector.load %arg6[%c0_147, %c0_148, %c64_149] : memref<1x16x128xf32, #tpu.memory_space<vmem>>, vector<1x16x32xf32>
      %194 = vector.shape_cast %193 : vector<1x16x32xf32> to vector<16x32xf32>
      %195 = vector.shape_cast %192 : vector<16x32xf32> to vector<1x16x32xf32>
      tpu.vector_store %arg6[%c0_147, %c0_148, %c64_149], %195 {strides = array<i32>} : memref<1x16x128xf32, #tpu.memory_space<vmem>>, vector<1x16x32xf32>,
      %c3_150 = arith.constant 3 : index
      %c0_151 = arith.constant 0 : index
      %c0_152 = arith.constant 0 : index
      %196 = vector.load %arg9[%c3_150, %c0_151, %c0_152] : memref<4x16x1xf32, #tpu.memory_space<vmem>>, vector<1x16x1xf32>
      %197 = vector.shape_cast %196 : vector<1x16x1xf32> to vector<16x1xf32>
      %198 = tpu.reciprocal %197 : vector<16x1xf32> -> vector<16x1xf32>
      %c3_153 = arith.constant 3 : index
      %c0_154 = arith.constant 0 : index
      %c0_155 = arith.constant 0 : index
      %199 = vector.load %arg10[%c3_153, %c0_154, %c0_155] : memref<4x16x32xf32, #tpu.memory_space<vmem>>, vector<1x16x32xf32>
      %200 = vector.shape_cast %199 : vector<1x16x32xf32> to vector<16x32xf32>
      %201 = vector.broadcast %198 : vector<16x1xf32> to vector<16x32xf32>
      %202 = arith.mulf %200, %201 : vector<16x32xf32>
      %c0_156 = arith.constant 0 : index
      %c0_157 = arith.constant 0 : index
      %c96_158 = arith.constant 96 : index
      %203 = vector.load %arg6[%c0_156, %c0_157, %c96_158] : memref<1x16x128xf32, #tpu.memory_space<vmem>>, vector<1x16x32xf32>
      %204 = vector.shape_cast %203 : vector<1x16x32xf32> to vector<16x32xf32>
      %205 = vector.shape_cast %202 : vector<16x32xf32> to vector<1x16x32xf32>
      tpu.vector_store %arg6[%c0_156, %c0_157, %c96_158], %205 {strides = array<i32>} : memref<1x16x128xf32, #tpu.memory_space<vmem>>, vector<1x16x32xf32>,
    } else {
    }
    return
  }
  func.func @transform_0(%arg0: i32, %arg1: i32, %arg2: i32) -> (i32, i32, i32) {
    %c0_i32 = arith.constant 0 : i32
    %c0_i32_0 = arith.constant 0 : i32
    return %arg0, %arg1, %c0_i32 : i32, i32, i32
  }
  func.func @transform_1(%arg0: i32, %arg1: i32, %arg2: i32) -> (i32, i32, i32) {
    %c0_i32 = arith.constant 0 : i32
    %c0_i32_0 = arith.constant 0 : i32
    return %arg0, %arg2, %c0_i32 : i32, i32, i32
  }
  func.func @transform_2(%arg0: i32, %arg1: i32, %arg2: i32) -> (i32, i32, i32) {
    %c0_i32 = arith.constant 0 : i32
    %c0_i32_0 = arith.constant 0 : i32
    return %arg0, %arg2, %c0_i32 : i32, i32, i32
  }
  func.func @transform_3(%arg0: i32, %arg1: i32, %arg2: i32) -> (i32, i32, i32) {
    %c0_i32 = arith.constant 0 : i32
    %c0_i32_0 = arith.constant 0 : i32
    return %arg0, %arg1, %c0_i32 : i32, i32, i32
  }
}

</mosaic_0001>

<llo_original>
// kernel: tpu_custom_call.1
$region0: #{tpu_custom_call.1}
  #allocation0 [shape = 'u32[]', space=smem, size = 0x4, offset = 0x4, fixed_abs, tag = 'smem constant byte address 0x4 - core index']
  #allocation1 [shape = 'u32[144,128]{1,0:T(1,128)}', space=vmem, size = 0x12000, scoped, tag = 'internal scratch']
  #allocation2 [shape = 'f32[4,16,32]{2,1,0:T(8,128)}', space=vmem, size = 0x8000, scoped, tag = 'scratch operand']
  #allocation3 [shape = 'f32[4,16,1]{2,1,0:T(8,128)}', space=vmem, size = 0x8000, scoped, tag = 'scratch operand']
  #allocation4 [shape = 'f32[4,16,1]{2,1,0:T(8,128)}', space=vmem, size = 0x8000, scoped, tag = 'scratch operand']
  #allocation5 [shape = 'f32[4,16,32]{2,1,0:T(8,128)}', space=vmem, size = 0x8000, scoped, tag = 'scratch operand']
  %s0 = inlined_call_operand.hbm [shape: f32[2,16,128], index: 0, kind: input, shape index: {}]
  %s1 = inlined_call_operand.hbm [shape: f32[2,16,128], index: 1, kind: input, shape index: {}]
  %s2 = inlined_call_operand.hbm [shape: f32[2,16,128], index: 2, kind: input, shape index: {}]
  %s3 = inlined_call_operand.hbm [shape: f32[2,16,128], index: 3, kind: output, shape index: {}]
  %s4 = sld [smem:[#allocation0]]
  $region65: #{tpu_custom_call.1} parent=0
    _
  %s6 = ssub.s32 1, %s4
  %s7 = scalar_select 0, %s6, %s4
  $region1: #{tpu_custom_call.1} parent=0
    #allocation6 [shape = 'u8[16384]{0}', space=vmem, size = 0x4000, scoped, tag = 'input window, operand 0']
    #allocation7 [shape = 's32[2]{0}', space=sflag, size = 0x8, scoped, tag = 'scoped memory for tpu_custom_call.1']
    #allocation8 [shape = 's32[2]{0}', space=sflag, size = 0x8, scoped, tag = 'scoped memory for tpu_custom_call.1']
    #allocation9 [shape = 'u8[16384]{0}', space=vmem, size = 0x4000, scoped, tag = 'input window, operand 1']
    #allocation10 [shape = 's32[2]{0}', space=sflag, size = 0x8, scoped, tag = 'scoped memory for tpu_custom_call.1']
    #allocation11 [shape = 'u8[16384]{0}', space=vmem, size = 0x4000, scoped, tag = 'input window, operand 2']
    #allocation12 [shape = 'u8[16384]{0}', space=vmem, size = 0x4000, scoped, tag = 'output window, operand 0']
    %8 = vsyncpa [#allocation7], 0
    %s9 = scalar_lea.sflag [#allocation7], 1
    %10 = vsyncpa %s9, 0
    %11 = vsyncpa [#allocation10], 0
    %s12 = scalar_lea.sflag [#allocation10], 1
    %13 = vsyncpa %s12, 0
    %14 = vsyncpa [#allocation8], 0
    %s15 = scalar_lea.sflag [#allocation8], 1
    %16 = vsyncpa %s15, 0
    loop: start=0, step=1, limit=4
    $region2: #{tpu_custom_call.1} parent=1 // loop_pre_header
      _
    $region3: #{tpu_custom_call.1} parent=1 // loop_header
      %s18 = sphi 0, %s22
      %p19 = scmp.ge.s32.totalorder %s18, 4
      %s25 = sphi 0, %s44
      %s26 = sphi 0, %s40
      %s27 = sphi 0, %s36
      %s28 = sphi 0, %s25
      %s29 = sphi 0, %s26
      %s30 = sphi 0, %s27
      %s31 = sphi 0, %s28
      %s32 = sphi 0, %s29
      %s33 = sphi 0, %s30
      %s49 = sphi 0, %s51
      %s52 = sphi 0, %s49
      %s53 = sphi 0, %s52
      %s69 = sphi 0, %s53
      %s77 = sphi 0, %s79
      %s80 = sphi 0, %s77
      %s81 = sphi 0, %s80
      %s97 = sphi 0, %s81
      %s105 = sphi 0, %s107
      %s108 = sphi 0, %s105
      %s109 = sphi 0, %s108
      %s125 = sphi 0, %s109
      %s133 = sphi 0, %s135
      %s136 = sphi 0, %s133
      %s137 = sphi 0, %s136
      %s153 = sphi 0, %s137
    $region4: #{tpu_custom_call.1} parent=1 // loop_header_branch
      %21 = sbr.rel (%p19) target = $region8
    $region5: #{tpu_custom_call.1} parent=1 // loop_body
      %s23 = ssub.s32 %s18, 1
      %s24 = ssub.s32 %s18, 2
      %s34 = sadd.s32 1, %s27
      %p35 = scmp.ge.s32.totalorder %s34, 1
      %s36 = scalar_select %p35, 0, %s34
      %s37 = sadd.s32 1, %s26
      %s38 = scalar_select %p35, %s37, %s26
      %p39 = scmp.ge.s32.totalorder %s38, 1
      %s40 = scalar_select %p39, 0, %s38
      %s41 = sadd.s32 1, %s25
      %s42 = scalar_select %p39, %s41, %s25
      %p43 = scmp.ge.s32.totalorder %s42, 2
      %s44 = scalar_select %p43, 0, %s42
      %s45 = ssub.s32 %s25, %s44
      %s46 = ssub.s32 %s26, %s40
      %s47 = sor.u32 %s45, %s46
      %p48 = scmp.eq.s32.totalorder %s47, 0
      %s50 = sadd.s32 %s49, 1
      %s51 = scalar_select %p48, %s49, %s50
      %p54 = pneg %p48
      %p55 = scmp.eq.s32.totalorder %s18, 1
      %p56 = por %p54, %p55
      %p57 = scmp.ne.s32.totalorder %s49, %s52
      %p58 = scmp.eq.s32.totalorder %s18, 0
      %p59 = por %p57, %p58
      %p60 = scmp.ne.s32.totalorder %s49, %s52
      %p61 = scmp.eq.s32.totalorder %s23, 1
      %p62 = por %p60, %p61
      %p63 = scmp.ne.s32.totalorder %s52, %s53
      %p64 = scmp.eq.s32.totalorder %s23, 0
      %p65 = por %p63, %p64
      %p66 = scmp.ne.s32.totalorder %s52, %s53
      %p67 = scmp.eq.s32.totalorder %s24, 1
      %p68 = por %p66, %p67
      %p70 = scmp.ne.s32.totalorder %s53, %s69
      %p71 = scmp.eq.s32.totalorder %s24, 0
      %p72 = por %p70, %p71
      %s73 = ssub.s32 %s25, %s44
      %s74 = ssub.s32 %s27, %s36
      %s75 = sor.u32 %s73, %s74
      %p76 = scmp.eq.s32.totalorder %s75, 0
      %s78 = sadd.s32 %s77, 1
      %s79 = scalar_select %p76, %s77, %s78
      %p82 = pneg %p76
      %p83 = scmp.eq.s32.totalorder %s18, 1
      %p84 = por %p82, %p83
      %p85 = scmp.ne.s32.totalorder %s77, %s80
      %p86 = scmp.eq.s32.totalorder %s18, 0
      %p87 = por %p85, %p86
      %p88 = scmp.ne.s32.totalorder %s77, %s80
      %p89 = scmp.eq.s32.totalorder %s23, 1
      %p90 = por %p88, %p89
      %p91 = scmp.ne.s32.totalorder %s80, %s81
      %p92 = scmp.eq.s32.totalorder %s23, 0
      %p93 = por %p91, %p92
      %p94 = scmp.ne.s32.totalorder %s80, %s81
      %p95 = scmp.eq.s32.totalorder %s24, 1
      %p96 = por %p94, %p95
      %p98 = scmp.ne.s32.totalorder %s81, %s97
      %p99 = scmp.eq.s32.totalorder %s24, 0
      %p100 = por %p98, %p99
      %s101 = ssub.s32 %s25, %s44
      %s102 = ssub.s32 %s27, %s36
      %s103 = sor.u32 %s101, %s102
      %p104 = scmp.eq.s32.totalorder %s103, 0
      %s106 = sadd.s32 %s105, 1
      %s107 = scalar_select %p104, %s105, %s106
      %p110 = pneg %p104
      %p111 = scmp.eq.s32.totalorder %s18, 1
      %p112 = por %p110, %p111
      %p113 = scmp.ne.s32.totalorder %s105, %s108
      %p114 = scmp.eq.s32.totalorder %s18, 0
      %p115 = por %p113, %p114
      %p116 = scmp.ne.s32.totalorder %s105, %s108
      %p117 = scmp.eq.s32.totalorder %s23, 1
      %p118 = por %p116, %p117
      %p119 = scmp.ne.s32.totalorder %s108, %s109
      %p120 = scmp.eq.s32.totalorder %s23, 0
      %p121 = por %p119, %p120
      %p122 = scmp.ne.s32.totalorder %s108, %s109
      %p123 = scmp.eq.s32.totalorder %s24, 1
      %p124 = por %p122, %p123
      %p126 = scmp.ne.s32.totalorder %s109, %s125
      %p127 = scmp.eq.s32.totalorder %s24, 0
      %p128 = por %p126, %p127
      %s129 = ssub.s32 %s25, %s44
      %s130 = ssub.s32 %s26, %s40
      %s131 = sor.u32 %s129, %s130
      %p132 = scmp.eq.s32.totalorder %s131, 0
      %s134 = sadd.s32 %s133, 1
      %s135 = scalar_select %p132, %s133, %s134
      %p138 = pneg %p132
      %p139 = scmp.eq.s32.totalorder %s18, 1
      %p140 = por %p138, %p139
      %p141 = scmp.ne.s32.totalorder %s133, %s136
      %p142 = scmp.eq.s32.totalorder %s18, 0
      %p143 = por %p141, %p142
      %p144 = scmp.ne.s32.totalorder %s133, %s136
      %p145 = scmp.eq.s32.totalorder %s23, 1
      %p146 = por %p144, %p145
      %p147 = scmp.ne.s32.totalorder %s136, %s137
      %p148 = scmp.eq.s32.totalorder %s23, 0
      %p149 = por %p147, %p148
      %p150 = scmp.ne.s32.totalorder %s136, %s137
      %p151 = scmp.eq.s32.totalorder %s24, 1
      %p152 = por %p150, %p151
      %p154 = scmp.ne.s32.totalorder %s137, %s153
      %p155 = scmp.eq.s32.totalorder %s24, 0
      %p156 = por %p154, %p155
      %p157 = scmp.le.s32.totalorder 1, %s18
      %p158 = scmp.lt.s32.totalorder %s18, 3
      %p159 = pnand %p157, %p158
      %p160 = pneg %p159
      // Predicated region
      $region9: #{tpu_custom_call.1} parent=5 // pred_check
        _
      $region10: #{tpu_custom_call.1} parent=5 // pred_check_branch
        %162 = sbr.rel (%p159) target = $region12
      $region11: #{tpu_custom_call.1} parent=5 // pred_region
        %s163 = ssub.s32 %s18, 1
      $region12: #{tpu_custom_call.1} parent=5 // pred_fallthru
        _
      %p164 = scmp.lt.s32.totalorder %s18, 2
      // Predicated region
      $region13: #{tpu_custom_call.1} parent=5 // pred_check
        %p165 = pneg %p164
      $region14: #{tpu_custom_call.1} parent=5 // pred_check_branch
        %167 = sbr.rel (%p165) target = $region16
      $region15: #{tpu_custom_call.1} parent=5 // pred_region
        // Predicated region
        $region17: #{tpu_custom_call.1} parent=15 // pred_check
          %p168 = pneg %p59
        $region18: #{tpu_custom_call.1} parent=15 // pred_check_branch
          %170 = sbr.rel (%p168) target = $region20
        $region19: #{tpu_custom_call.1} parent=15 // pred_region
          %s171 = sand.u32 %s49, 1
          %s172 = scalar_lea.sflag [#allocation7], %s171
          %s173 = sand.u32 %s49, 1
          %s174 = smul.addr %s173, 16
          %s175 = scalar_lea.vmem [#allocation6], %s174
          %s176 = smul.u32 2, %s26
          %s178 = ssub.s32 256, 256
          %179 = vsyncadd %s172, %s178
          %s180 = smul.addr %s25, 2
          %s181 = sadd.s32 %s176, %s180
          %s182 = smul.addr %s181, 128
          %s183 = scalar_lea.hbm %s0, %s182
          %s184 = sshll.u32 %s175, 4
          %s185 = int_to_ptr.vmem [resolvable:$true] %s184
          %190 = dma.hbm_to_vmem [thread:$0]  %s183, 256, %s185, %s172, 128, 128, 8
        $region20: #{tpu_custom_call.1} parent=15 // pred_fallthru
          _
        // Predicated region
        $region21: #{tpu_custom_call.1} parent=15 // pred_check
          %p191 = pneg %p87
        $region22: #{tpu_custom_call.1} parent=15 // pred_check_branch
          %193 = sbr.rel (%p191) target = $region24
        $region23: #{tpu_custom_call.1} parent=15 // pred_region
          %s194 = sand.u32 %s18, 1
          %s195 = scalar_lea.sflag [#allocation10], %s194
          %s196 = sand.u32 %s77, 1
          %s197 = smul.addr %s196, 16
          %s198 = scalar_lea.vmem [#allocation9], %s197
          %s199 = smul.u32 2, %s27
          %s201 = ssub.s32 256, 256
          %202 = vsyncadd %s195, %s201
          %s203 = smul.addr %s25, 2
          %s204 = sadd.s32 %s199, %s203
          %s205 = smul.addr %s204, 128
          %s206 = scalar_lea.hbm %s1, %s205
          %s207 = sshll.u32 %s198, 4
          %s208 = int_to_ptr.vmem [resolvable:$true] %s207
          %213 = dma.hbm_to_vmem [thread:$0]  %s206, 256, %s208, %s195, 128, 128, 8
        $region24: #{tpu_custom_call.1} parent=15 // pred_fallthru
          _
        // Predicated region
        $region25: #{tpu_custom_call.1} parent=15 // pred_check
          %p214 = pneg %p115
        $region26: #{tpu_custom_call.1} parent=15 // pred_check_branch
          %216 = sbr.rel (%p214) target = $region28
        $region27: #{tpu_custom_call.1} parent=15 // pred_region
          %s217 = sand.u32 %s18, 1
          %s218 = scalar_lea.sflag [#allocation10], %s217
          %s219 = sand.u32 %s105, 1
          %s220 = smul.addr %s219, 16
          %s221 = scalar_lea.vmem [#allocation11], %s220
          %s222 = smul.u32 2, %s27
          %s224 = ssub.s32 256, 256
          %225 = vsyncadd %s218, %s224
          %s226 = smul.addr %s25, 2
          %s227 = sadd.s32 %s222, %s226
          %s228 = smul.addr %s227, 128
          %s229 = scalar_lea.hbm %s2, %s228
          %s230 = sshll.u32 %s221, 4
          %s231 = int_to_ptr.vmem [resolvable:$true] %s230
          %236 = dma.hbm_to_vmem [thread:$0]  %s229, 256, %s231, %s218, 128, 128, 8
        $region28: #{tpu_custom_call.1} parent=15 // pred_fallthru
          _
      $region16: #{tpu_custom_call.1} parent=5 // pred_fallthru
        _
      %p237 = scmp.le.s32.totalorder 1, %s18
      %p238 = scmp.lt.s32.totalorder %s18, 3
      %p239 = pnand %p237, %p238
      %p240 = pneg %p239
      // Predicated region
      $region29: #{tpu_custom_call.1} parent=5 // pred_check
        _
      $region30: #{tpu_custom_call.1} parent=5 // pred_check_branch
        %242 = sbr.rel (%p239) target = $region32
      $region31: #{tpu_custom_call.1} parent=5 // pred_region
        %s243 = ssub.s32 %s18, 1
        %s244 = sand.u32 %s52, 1
        %s245 = scalar_lea.sflag [#allocation7], %s244
        %s246 = sand.u32 %s52, 1
        %s247 = smul.addr %s246, 16
        %s248 = scalar_lea.vmem [#allocation6], %s247
        // Predicated region
        $region33: #{tpu_custom_call.1} parent=31 // pred_check
          %p249 = pneg %p65
        $region34: #{tpu_custom_call.1} parent=31 // pred_check_branch
          %251 = sbr.rel (%p249) target = $region36
        $region35: #{tpu_custom_call.1} parent=31 // pred_region
          %252 = dma.done %s245, 256
        $region36: #{tpu_custom_call.1} parent=31 // pred_fallthru
          _
        %s253 = sand.u32 %s23, 1
        %s254 = scalar_lea.sflag [#allocation10], %s253
        %s255 = sand.u32 %s80, 1
        %s256 = smul.addr %s255, 16
        %s257 = scalar_lea.vmem [#allocation9], %s256
        // Predicated region
        $region37: #{tpu_custom_call.1} parent=31 // pred_check
          %p258 = pneg %p93
        $region38: #{tpu_custom_call.1} parent=31 // pred_check_branch
          %260 = sbr.rel (%p258) target = $region40
        $region39: #{tpu_custom_call.1} parent=31 // pred_region
          %261 = dma.done %s254, 256
        $region40: #{tpu_custom_call.1} parent=31 // pred_fallthru
          _
        %s262 = sand.u32 %s23, 1
        %s263 = scalar_lea.sflag [#allocation10], %s262
        %s264 = sand.u32 %s108, 1
        %s265 = smul.addr %s264, 16
        %s266 = scalar_lea.vmem [#allocation11], %s265
        // Predicated region
        $region41: #{tpu_custom_call.1} parent=31 // pred_check
          %p267 = pneg %p121
        $region42: #{tpu_custom_call.1} parent=31 // pred_check_branch
          %269 = sbr.rel (%p267) target = $region44
        $region43: #{tpu_custom_call.1} parent=31 // pred_region
          %270 = dma.done %s263, 256
        $region44: #{tpu_custom_call.1} parent=31 // pred_fallthru
          _
        %s271 = sand.u32 %s52, 1
        %s272 = scalar_lea.sflag [#allocation7], %s271
        %s273 = sand.u32 %s52, 1
        %s274 = smul.addr %s273, 16
        %s275 = scalar_lea.vmem [#allocation6], %s274
        %p276 = pneg %p65
        %p277 = pneg %p62
        %s278 = sand.u32 %s23, 1
        %s279 = scalar_lea.sflag [#allocation10], %s278
        %s280 = sand.u32 %s80, 1
        %s281 = smul.addr %s280, 16
        %s282 = scalar_lea.vmem [#allocation9], %s281
        %p283 = pneg %p93
        %p284 = pneg %p90
        %s285 = sand.u32 %s23, 1
        %s286 = scalar_lea.sflag [#allocation10], %s285
        %s287 = sand.u32 %s108, 1
        %s288 = smul.addr %s287, 16
        %s289 = scalar_lea.vmem [#allocation11], %s288
        %p290 = pneg %p121
        %p291 = pneg %p118
        %p292 = pneg %p149
        %p293 = pneg %p146
        %s294 = sand.u32 %s136, 1
        %s295 = scalar_lea.sflag [#allocation8], %s294
        %s296 = sand.u32 %s136, 1
        %s297 = smul.addr %s296, 16
        %s298 = scalar_lea.vmem [#allocation12], %s297
        %s299 = smul.u32 2, %s29
        %s300 = smul.u32 2, %s30
        %s301 = smul.u32 2, %s30
        %s302 = smul.u32 2, %s29
        %p303 = scmp.eq.s32.totalorder %s30, 0
        // Predicated region
        $region45: #{tpu_custom_call.1} parent=31 // pred_check
          %p304 = pneg %p303
        $region46: #{tpu_custom_call.1} parent=31 // pred_check_branch
          %306 = sbr.rel (%p304) target = $region48
        $region47: #{tpu_custom_call.1} parent=31 // pred_region
          %vm307 = vcmask 7168
          %308 = vst.msk [vmem:[#allocation3] sm:$0xff] %vm307, -inf
          %309 = vst.msk [vmem:[#allocation3 + $0x8] sm:$0xff] %vm307, -inf
          %310 = vst.msk [vmem:[#allocation3 + $0x10] sm:$0xff] %vm307, -inf
          %311 = vst.msk [vmem:[#allocation3 + $0x18] sm:$0xff] %vm307, -inf
          %312 = vst.msk [vmem:[#allocation3 + $0x20] sm:$0xff] %vm307, -inf
          %313 = vst.msk [vmem:[#allocation3 + $0x28] sm:$0xff] %vm307, -inf
          %314 = vst.msk [vmem:[#allocation3 + $0x30] sm:$0xff] %vm307, -inf
          %315 = vst.msk [vmem:[#allocation3 + $0x38] sm:$0xff] %vm307, -inf
          %316 = vst.msk [vmem:[#allocation4] sm:$0xff] %vm307, 0.0
          %317 = vst.msk [vmem:[#allocation4 + $0x8] sm:$0xff] %vm307, 0.0
          %318 = vst.msk [vmem:[#allocation4 + $0x10] sm:$0xff] %vm307, 0.0
          %319 = vst.msk [vmem:[#allocation4 + $0x18] sm:$0xff] %vm307, 0.0
          %320 = vst.msk [vmem:[#allocation4 + $0x20] sm:$0xff] %vm307, 0.0
          %321 = vst.msk [vmem:[#allocation4 + $0x28] sm:$0xff] %vm307, 0.0
          %322 = vst.msk [vmem:[#allocation4 + $0x30] sm:$0xff] %vm307, 0.0
          %323 = vst.msk [vmem:[#allocation4 + $0x38] sm:$0xff] %vm307, 0.0
          %vm324 = vcmask 261120
          %325 = vst.msk [vmem:[#allocation5] sm:$0xff] %vm324, 0.0
          %326 = vst.msk [vmem:[#allocation5 + $0x8] sm:$0xff] %vm324, 0.0
          %327 = vst.msk [vmem:[#allocation5 + $0x10] sm:$0xff] %vm324, 0.0
          %328 = vst.msk [vmem:[#allocation5 + $0x18] sm:$0xff] %vm324, 0.0
          %329 = vst.msk [vmem:[#allocation5 + $0x20] sm:$0xff] %vm324, 0.0
          %330 = vst.msk [vmem:[#allocation5 + $0x28] sm:$0xff] %vm324, 0.0
          %331 = vst.msk [vmem:[#allocation5 + $0x30] sm:$0xff] %vm324, 0.0
          %332 = vst.msk [vmem:[#allocation5 + $0x38] sm:$0xff] %vm324, 0.0
          %v333 = vld [vmem:[%s248] sm:$0xff]
          %v334 = vld [vmem:[%s248 + $0x8] sm:$0xff]
          %335 = vst.msk [vmem:[#allocation2] sm:$0xff] %vm324, %v333
          %336 = vst.msk [vmem:[#allocation2 + $0x8] sm:$0xff] %vm324, %v334
          %v337 = vld [vmem:[%s248] sm:$0xff]
          %v338 = vld [vmem:[%s248 + $0x8] sm:$0xff]
          %341 = vrot.lane.b32.xlu0 %v337, 96
          %v342 = vpop.permute.xlu0 %341
          %343 = vrot.lane.b32.xlu0 %v338, 96
          %v344 = vpop.permute.xlu0 %343
          %s347 = scalar_lea.vmem [#allocation2], 16
          %348 = vst.msk [vmem:[%s347] sm:$0xff] %vm324, %v342
          %349 = vst.msk [vmem:[%s347 + $0x8] sm:$0xff] %vm324, %v344
          %v350 = vld [vmem:[%s248] sm:$0xff]
          %v351 = vld [vmem:[%s248 + $0x8] sm:$0xff]
          %354 = vrot.lane.b32.xlu0 %v350, 64
          %v355 = vpop.permute.xlu0 %354
          %356 = vrot.lane.b32.xlu0 %v351, 64
          %v357 = vpop.permute.xlu0 %356
          %s360 = scalar_lea.vmem [#allocation2], 32
          %361 = vst.msk [vmem:[%s360] sm:$0xff] %vm324, %v355
          %362 = vst.msk [vmem:[%s360 + $0x8] sm:$0xff] %vm324, %v357
          %v363 = vld [vmem:[%s248] sm:$0xff]
          %v364 = vld [vmem:[%s248 + $0x8] sm:$0xff]
          %367 = vrot.lane.b32.xlu0 %v363, 32
          %v368 = vpop.permute.xlu0 %367
          %369 = vrot.lane.b32.xlu0 %v364, 32
          %v370 = vpop.permute.xlu0 %369
          %s373 = scalar_lea.vmem [#allocation2], 48
          %374 = vst.msk [vmem:[%s373] sm:$0xff] %vm324, %v368
          %375 = vst.msk [vmem:[%s373 + $0x8] sm:$0xff] %vm324, %v370
        $region48: #{tpu_custom_call.1} parent=31 // pred_fallthru
          _
        %v376 = vld [vmem:[%s257] sm:$0xff]
        %v377 = vld [vmem:[%s257 + $0x8] sm:$0xff]
        %v378 = vld [vmem:[%s266] sm:$0xff]
        %v379 = vld [vmem:[%s266 + $0x8] sm:$0xff]
        %v380 = vld [vmem:[#allocation2] sm:$0xff]
        %v381 = vld [vmem:[#allocation2 + $0x8] sm:$0xff]
        %vm382 = vcmask 261120
        %v384 = vsel %vm382, %v380, 0
        %v387 = vsel %vm382, %v381, 0
        %v390 = vsel %vm382, %v376, 0
        %v393 = vsel %vm382, %v377, 0
        %395 = vmatprep.subr.mxu0 0.0
        %396 = vmatpush1.xpose.msra.mxu0 %v390
        %397 = vmatprep.subr.mxu0 0.0
        %398 = vmatpush1.xpose.msra.mxu0 %v393
        %399 = vmatprep.subr.mxu0 0.0
        %400 = vmatpush1.xpose.msra.mxu0 0.0
        %401 = vmatprep.subr.mxu0 0.0
        %402 = vmatpush1.xpose.msra.mxu0 0.0
        %403 = vmatprep.subr.mxu0 0.0
        %404 = vmatpush1.xpose.msra.mxu0 0.0
        %405 = vmatprep.subr.mxu0 0.0
        %406 = vmatpush1.xpose.msra.mxu0 0.0
        %407 = vmatprep.subr.mxu0 0.0
        %408 = vmatpush1.xpose.msra.mxu0 0.0
        %409 = vmatprep.subr.mxu0 0.0
        %410 = vmatpush1.xpose.msra.mxu0 0.0
        %411 = vmatprep.subr.mxu0 0.0
        %412 = vmatpush1.xpose.msra.mxu0 0.0
        %413 = vmatprep.subr.mxu0 0.0
        %414 = vmatpush1.xpose.msra.mxu0 0.0
        %415 = vmatprep.subr.mxu0 0.0
        %416 = vmatpush1.xpose.msra.mxu0 0.0
        %417 = vmatprep.subr.mxu0 0.0
        %418 = vmatpush1.xpose.msra.mxu0 0.0
        %419 = vmatprep.subr.mxu0 0.0
        %420 = vmatpush1.xpose.msra.mxu0 0.0
        %421 = vmatprep.subr.mxu0 0.0
        %422 = vmatpush1.xpose.msra.mxu0 0.0
        %423 = vmatprep.subr.mxu0 0.0
        %424 = vmatpush1.xpose.msra.mxu0 0.0
        %425 = vmatprep.subr.mxu0 0.0
        %426 = vmatpush1.xpose.msra.mxu0 0.0
        %427 = vmatprep.subr.mxu0 0.0
        %428 = vmatpush1.xpose.msra.mxu0 0.0
        %429 = vmatprep.subr.mxu0 0.0
        %430 = vmatpush1.xpose.msra.mxu0 0.0
        %431 = vmatprep.subr.mxu0 0.0
        %432 = vmatpush1.xpose.msra.mxu0 0.0
        %433 = vmatprep.subr.mxu0 0.0
        %434 = vmatpush1.xpose.msra.mxu0 0.0
        %435 = vmatprep.subr.mxu0 0.0
        %436 = vmatpush1.xpose.msra.mxu0 0.0
        %437 = vmatprep.subr.mxu0 0.0
        %438 = vmatpush1.xpose.msra.mxu0 0.0
        %439 = vmatprep.subr.mxu0 0.0
        %440 = vmatpush1.xpose.msra.mxu0 0.0
        %441 = vmatprep.subr.mxu0 0.0
        %442 = vmatpush1.xpose.msra.mxu0 0.0
        %443 = vmatprep.subr.mxu0 0.0
        %444 = vmatpush1.xpose.msra.mxu0 0.0
        %445 = vmatprep.subr.mxu0 0.0
        %446 = vmatpush1.xpose.msra.mxu0 0.0
        %447 = vmatprep.subr.mxu0 0.0
        %448 = vmatpush1.xpose.msra.mxu0 0.0
        %449 = vmatprep.subr.mxu0 0.0
        %450 = vmatpush1.xpose.msra.mxu0 0.0
        %451 = vmatprep.subr.mxu0 0.0
        %452 = vmatpush1.xpose.msra.mxu0 0.0
        %453 = vmatprep.subr.mxu0 0.0
        %454 = vmatpush1.xpose.msra.mxu0 0.0
        %455 = vmatprep.subr.mxu0 0.0
        %456 = vmatpush1.xpose.msra.mxu0 0.0
        %457 = vmatprep.subr.mxu0 0.0
        %458 = vmatpush1.xpose.msra.mxu0 0.0
        %459 = vmatprep.mubr.f32.mxu0 0.0
        %460 = vmatmul.mubr.f32.gmra.mrb[0].mxu0 %v384
        %v461 = vpop.f32.mrb[0].mxu0
        %v462 = vadd.f32 0.0, %v461
        %v463 = vpop.f32.mrb[0].mxu0
        %464 = vmatprep.mubr.f32.mxu0 0.0
        %465 = vmatmul.mubr.f32.gmra.mrb[0].mxu0 %v387
        %v466 = vpop.f32.mrb[0].mxu0
        %v467 = vadd.f32 0.0, %v466
        %v468 = vpop.f32.mrb[0].mxu0
        %469 = vdwg.mxu0
        %v470 = vmul.f32 %v462, 0.17677669
        %v471 = vmul.f32 %v467, 0.17677669
        %v472 = vld [vmem:[#allocation3] sm:$0xff]
        %v473 = vld [vmem:[#allocation3 + $0x8] sm:$0xff]
        %vm474 = vcmask 130048
        %v475 = vsel %vm474, %v470, -inf
        %476 = vmax.xlane.f32.xlu0 %v475
        %v477 = vpop.xlane.xlu0 %476
        %v478 = vsel %vm474, %v471, -inf
        %479 = vmax.xlane.f32.xlu0 %v478
        %v480 = vpop.xlane.xlu0 %479
        %v481 = vmax.f32 %v472, %v477
        %v482 = vmax.f32 %v473, %v480
        %v483 = vsub.f32 %v472, %v481
        %v484 = vsub.f32 %v473, %v482
        %v485 = vmul.f32 %v483, 1.442695
        %v486 = vpow.pop %v485
        %v487 = vmul.f32 %v484, 1.442695
        %v488 = vpow.pop %v487
        %490 = vset.pattern.permute.xlu0 0
        %491 = vperm.xlu0 %490, %v481
        %v492 = vpop.permute.xlu0 %491
        %495 = vset.pattern.permute.xlu0 0
        %496 = vperm.xlu0 %495, %v482
        %v497 = vpop.permute.xlu0 %496
        %v499 = vsub.f32 %v470, %v492
        %v500 = vsub.f32 %v471, %v497
        %v501 = vmul.f32 %v499, 1.442695
        %v502 = vpow.pop %v501
        %v503 = vmul.f32 %v500, 1.442695
        %v504 = vpow.pop %v503
        %v505 = vld [vmem:[#allocation4] sm:$0xff]
        %v506 = vld [vmem:[#allocation4 + $0x8] sm:$0xff]
        %v507 = vmul.f32 %v486, %v505
        %v508 = vmul.f32 %v488, %v506
        %v509 = vsel %vm474, %v502, 0.0
        %510 = vadd.xlane.f32.xlu0 %v509
        %v511 = vpop.xlane.xlu0 %510
        %v512 = vsel %vm474, %v504, 0.0
        %513 = vadd.xlane.f32.xlu0 %v512
        %v514 = vpop.xlane.xlu0 %513
        %v515 = vadd.f32 %v507, %v511
        %v516 = vadd.f32 %v508, %v514
        %vm517 = vcmask 7168
        %518 = vst.msk [vmem:[#allocation4] sm:$0xff] %vm517, %v515
        %519 = vst.msk [vmem:[#allocation4 + $0x8] sm:$0xff] %vm517, %v516
        %520 = vst.msk [vmem:[#allocation3] sm:$0xff] %vm517, %v481
        %521 = vst.msk [vmem:[#allocation3 + $0x8] sm:$0xff] %vm517, %v482
        %v523 = vsel %vm474, %v502, 0
        %v526 = vsel %vm474, %v504, 0
        %528 = vmatprep.subr.mxu0 0.0
        %529 = vmatpush1.msra.mxu0 %v378
        %530 = vmatprep.subr.mxu0 0.0
        %531 = vmatpush1.msra.mxu0 %v379
        %532 = vmatprep.subr.mxu0 0.0
        %533 = vmatpush1.msra.mxu0 0.0
        %534 = vmatprep.subr.mxu0 0.0
        %535 = vmatpush1.msra.mxu0 0.0
        %536 = vmatprep.subr.mxu0 0.0
        %537 = vmatpush1.msra.mxu0 0.0
        %538 = vmatprep.subr.mxu0 0.0
        %539 = vmatpush1.msra.mxu0 0.0
        %540 = vmatprep.subr.mxu0 0.0
        %541 = vmatpush1.msra.mxu0 0.0
        %542 = vmatprep.subr.mxu0 0.0
        %543 = vmatpush1.msra.mxu0 0.0
        %544 = vmatprep.subr.mxu0 0.0
        %545 = vmatpush1.msra.mxu0 0.0
        %546 = vmatprep.subr.mxu0 0.0
        %547 = vmatpush1.msra.mxu0 0.0
        %548 = vmatprep.subr.mxu0 0.0
        %549 = vmatpush1.msra.mxu0 0.0
        %550 = vmatprep.subr.mxu0 0.0
        %551 = vmatpush1.msra.mxu0 0.0
        %552 = vmatprep.subr.mxu0 0.0
        %553 = vmatpush1.msra.mxu0 0.0
        %554 = vmatprep.subr.mxu0 0.0
        %555 = vmatpush1.msra.mxu0 0.0
        %556 = vmatprep.subr.mxu0 0.0
        %557 = vmatpush1.msra.mxu0 0.0
        %558 = vmatprep.subr.mxu0 0.0
        %559 = vmatpush1.msra.mxu0 0.0
        %560 = vmatprep.subr.mxu0 0.0
        %561 = vmatpush1.msra.mxu0 0.0
        %562 = vmatprep.subr.mxu0 0.0
        %563 = vmatpush1.msra.mxu0 0.0
        %564 = vmatprep.subr.mxu0 0.0
        %565 = vmatpush1.msra.mxu0 0.0
        %566 = vmatprep.subr.mxu0 0.0
        %567 = vmatpush1.msra.mxu0 0.0
        %568 = vmatprep.subr.mxu0 0.0
        %569 = vmatpush1.msra.mxu0 0.0
        %570 = vmatprep.subr.mxu0 0.0
        %571 = vmatpush1.msra.mxu0 0.0
        %572 = vmatprep.subr.mxu0 0.0
        %573 = vmatpush1.msra.mxu0 0.0
        %574 = vmatprep.subr.mxu0 0.0
        %575 = vmatpush1.msra.mxu0 0.0
        %576 = vmatprep.subr.mxu0 0.0
        %577 = vmatpush1.msra.mxu0 0.0
        %578 = vmatprep.subr.mxu0 0.0
        %579 = vmatpush1.msra.mxu0 0.0
        %580 = vmatprep.subr.mxu0 0.0
        %581 = vmatpush1.msra.mxu0 0.0
        %582 = vmatprep.subr.mxu0 0.0
        %583 = vmatpush1.msra.mxu0 0.0
        %584 = vmatprep.subr.mxu0 0.0
        %585 = vmatpush1.msra.mxu0 0.0
        %586 = vmatprep.subr.mxu0 0.0
        %587 = vmatpush1.msra.mxu0 0.0
        %588 = vmatprep.subr.mxu0 0.0
        %589 = vmatpush1.msra.mxu0 0.0
        %590 = vmatprep.subr.mxu0 0.0
        %591 = vmatpush1.msra.mxu0 0.0
        %592 = vmatprep.mubr.f32.mxu0 0.0
        %593 = vmatmul.mubr.f32.gmra.mrb[0].mxu0 %v523
        %v594 = vpop.f32.mrb[0].mxu0
        %v595 = vadd.f32 0.0, %v594
        %v596 = vpop.f32.mrb[0].mxu0
        %597 = vmatprep.mubr.f32.mxu0 0.0
        %598 = vmatmul.mubr.f32.gmra.mrb[0].mxu0 %v526
        %v599 = vpop.f32.mrb[0].mxu0
        %v600 = vadd.f32 0.0, %v599
        %v601 = vpop.f32.mrb[0].mxu0
        %602 = vdwg.mxu0
        %v603 = vld [vmem:[#allocation5] sm:$0xff]
        %v604 = vld [vmem:[#allocation5 + $0x8] sm:$0xff]
        %606 = vset.pattern.permute.xlu0 0
        %607 = vperm.xlu0 %606, %v486
        %v608 = vpop.permute.xlu0 %607
        %611 = vset.pattern.permute.xlu0 0
        %612 = vperm.xlu0 %611, %v488
        %v613 = vpop.permute.xlu0 %612
        %v615 = vmul.f32 %v608, %v603
        %v616 = vmul.f32 %v613, %v604
        %v617 = vadd.f32 %v615, %v595
        %v618 = vadd.f32 %v616, %v600
        %619 = vst.msk [vmem:[#allocation5] sm:$0xff] %vm382, %v617
        %620 = vst.msk [vmem:[#allocation5 + $0x8] sm:$0xff] %vm382, %v618
        %v621 = vld [vmem:[%s257] sm:$0xff]
        %v622 = vld [vmem:[%s257 + $0x8] sm:$0xff]
        %v623 = vld [vmem:[%s266] sm:$0xff]
        %v624 = vld [vmem:[%s266 + $0x8] sm:$0xff]
        %s625 = scalar_lea.vmem [#allocation2], 16
        %v626 = vld [vmem:[%s625] sm:$0xff]
        %v627 = vld [vmem:[%s625 + $0x8] sm:$0xff]
        %630 = vrot.lane.b32.xlu0 %v621, 96
        %v631 = vpop.permute.xlu0 %630
        %632 = vrot.lane.b32.xlu0 %v622, 96
        %v633 = vpop.permute.xlu0 %632
        %v635 = vsel %vm382, %v626, 0
        %v638 = vsel %vm382, %v627, 0
        %v640 = vsel %vm382, %v631, 0
        %v642 = vsel %vm382, %v633, 0
        %644 = vmatprep.subr.mxu0 0.0
        %645 = vmatpush1.xpose.msra.mxu0 %v640
        %646 = vmatprep.subr.mxu0 0.0
        %647 = vmatpush1.xpose.msra.mxu0 %v642
        %648 = vmatprep.subr.mxu0 0.0
        %649 = vmatpush1.xpose.msra.mxu0 0.0
        %650 = vmatprep.subr.mxu0 0.0
        %651 = vmatpush1.xpose.msra.mxu0 0.0
        %652 = vmatprep.subr.mxu0 0.0
        %653 = vmatpush1.xpose.msra.mxu0 0.0
        %654 = vmatprep.subr.mxu0 0.0
        %655 = vmatpush1.xpose.msra.mxu0 0.0
        %656 = vmatprep.subr.mxu0 0.0
        %657 = vmatpush1.xpose.msra.mxu0 0.0
        %658 = vmatprep.subr.mxu0 0.0
        %659 = vmatpush1.xpose.msra.mxu0 0.0
        %660 = vmatprep.subr.mxu0 0.0
        %661 = vmatpush1.xpose.msra.mxu0 0.0
        %662 = vmatprep.subr.mxu0 0.0
        %663 = vmatpush1.xpose.msra.mxu0 0.0
        %664 = vmatprep.subr.mxu0 0.0
        %665 = vmatpush1.xpose.msra.mxu0 0.0
        %666 = vmatprep.subr.mxu0 0.0
        %667 = vmatpush1.xpose.msra.mxu0 0.0
        %668 = vmatprep.subr.mxu0 0.0
        %669 = vmatpush1.xpose.msra.mxu0 0.0
        %670 = vmatprep.subr.mxu0 0.0
        %671 = vmatpush1.xpose.msra.mxu0 0.0
        %672 = vmatprep.subr.mxu0 0.0
        %673 = vmatpush1.xpose.msra.mxu0 0.0
        %674 = vmatprep.subr.mxu0 0.0
        %675 = vmatpush1.xpose.msra.mxu0 0.0
        %676 = vmatprep.subr.mxu0 0.0
        %677 = vmatpush1.xpose.msra.mxu0 0.0
        %678 = vmatprep.subr.mxu0 0.0
        %679 = vmatpush1.xpose.msra.mxu0 0.0
        %680 = vmatprep.subr.mxu0 0.0
        %681 = vmatpush1.xpose.msra.mxu0 0.0
        %682 = vmatprep.subr.mxu0 0.0
        %683 = vmatpush1.xpose.msra.mxu0 0.0
        %684 = vmatprep.subr.mxu0 0.0
        %685 = vmatpush1.xpose.msra.mxu0 0.0
        %686 = vmatprep.subr.mxu0 0.0
        %687 = vmatpush1.xpose.msra.mxu0 0.0
        %688 = vmatprep.subr.mxu0 0.0
        %689 = vmatpush1.xpose.msra.mxu0 0.0
        %690 = vmatprep.subr.mxu0 0.0
        %691 = vmatpush1.xpose.msra.mxu0 0.0
        %692 = vmatprep.subr.mxu0 0.0
        %693 = vmatpush1.xpose.msra.mxu0 0.0
        %694 = vmatprep.subr.mxu0 0.0
        %695 = vmatpush1.xpose.msra.mxu0 0.0
        %696 = vmatprep.subr.mxu0 0.0
        %697 = vmatpush1.xpose.msra.mxu0 0.0
        %698 = vmatprep.subr.mxu0 0.0
        %699 = vmatpush1.xpose.msra.mxu0 0.0
        %700 = vmatprep.subr.mxu0 0.0
        %701 = vmatpush1.xpose.msra.mxu0 0.0
        %702 = vmatprep.subr.mxu0 0.0
        %703 = vmatpush1.xpose.msra.mxu0 0.0
        %704 = vmatprep.subr.mxu0 0.0
        %705 = vmatpush1.xpose.msra.mxu0 0.0
        %706 = vmatprep.subr.mxu0 0.0
        %707 = vmatpush1.xpose.msra.mxu0 0.0
        %708 = vmatprep.mubr.f32.mxu0 0.0
        %709 = vmatmul.mubr.f32.gmra.mrb[0].mxu0 %v635
        %v710 = vpop.f32.mrb[0].mxu0
        %v711 = vadd.f32 0.0, %v710
        %v712 = vpop.f32.mrb[0].mxu0
        %713 = vmatprep.mubr.f32.mxu0 0.0
        %714 = vmatmul.mubr.f32.gmra.mrb[0].mxu0 %v638
        %v715 = vpop.f32.mrb[0].mxu0
        %v716 = vadd.f32 0.0, %v715
        %v717 = vpop.f32.mrb[0].mxu0
        %718 = vdwg.mxu0
        %v719 = vmul.f32 %v711, 0.17677669
        %v720 = vmul.f32 %v716, 0.17677669
        %s721 = scalar_lea.vmem [#allocation3], 16
        %v722 = vld [vmem:[%s721] sm:$0xff]
        %v723 = vld [vmem:[%s721 + $0x8] sm:$0xff]
        %v724 = vsel %vm474, %v719, -inf
        %725 = vmax.xlane.f32.xlu0 %v724
        %v726 = vpop.xlane.xlu0 %725
        %v727 = vsel %vm474, %v720, -inf
        %728 = vmax.xlane.f32.xlu0 %v727
        %v729 = vpop.xlane.xlu0 %728
        %v730 = vmax.f32 %v722, %v726
        %v731 = vmax.f32 %v723, %v729
        %v732 = vsub.f32 %v722, %v730
        %v733 = vsub.f32 %v723, %v731
        %v734 = vmul.f32 %v732, 1.442695
        %v735 = vpow.pop %v734
        %v736 = vmul.f32 %v733, 1.442695
        %v737 = vpow.pop %v736
        %739 = vset.pattern.permute.xlu0 0
        %740 = vperm.xlu0 %739, %v730
        %v741 = vpop.permute.xlu0 %740
        %744 = vset.pattern.permute.xlu0 0
        %745 = vperm.xlu0 %744, %v731
        %v746 = vpop.permute.xlu0 %745
        %v748 = vsub.f32 %v719, %v741
        %v749 = vsub.f32 %v720, %v746
        %v750 = vmul.f32 %v748, 1.442695
        %v751 = vpow.pop %v750
        %v752 = vmul.f32 %v749, 1.442695
        %v753 = vpow.pop %v752
        %s754 = scalar_lea.vmem [#allocation4], 16
        %v755 = vld [vmem:[%s754] sm:$0xff]
        %v756 = vld [vmem:[%s754 + $0x8] sm:$0xff]
        %v757 = vmul.f32 %v735, %v755
        %v758 = vmul.f32 %v737, %v756
        %v759 = vsel %vm474, %v751, 0.0
        %760 = vadd.xlane.f32.xlu0 %v759
        %v761 = vpop.xlane.xlu0 %760
        %v762 = vsel %vm474, %v753, 0.0
        %763 = vadd.xlane.f32.xlu0 %v762
        %v764 = vpop.xlane.xlu0 %763
        %v765 = vadd.f32 %v757, %v761
        %v766 = vadd.f32 %v758, %v764
        %767 = vst.msk [vmem:[%s754] sm:$0xff] %vm517, %v765
        %768 = vst.msk [vmem:[%s754 + $0x8] sm:$0xff] %vm517, %v766
        %769 = vst.msk [vmem:[%s721] sm:$0xff] %vm517, %v730
        %770 = vst.msk [vmem:[%s721 + $0x8] sm:$0xff] %vm517, %v731
        %773 = vrot.lane.b32.xlu0 %v623, 96
        %v774 = vpop.permute.xlu0 %773
        %775 = vrot.lane.b32.xlu0 %v624, 96
        %v776 = vpop.permute.xlu0 %775
        %v780 = vsel %vm474, %v751, 0
        %v783 = vsel %vm474, %v753, 0
        %785 = vmatprep.subr.mxu0 0.0
        %786 = vmatpush1.msra.mxu0 %v774
        %787 = vmatprep.subr.mxu0 0.0
        %788 = vmatpush1.msra.mxu0 %v776
        %789 = vmatprep.subr.mxu0 0.0
        %790 = vmatpush1.msra.mxu0 0.0
        %791 = vmatprep.subr.mxu0 0.0
        %792 = vmatpush1.msra.mxu0 0.0
        %793 = vmatprep.subr.mxu0 0.0
        %794 = vmatpush1.msra.mxu0 0.0
        %795 = vmatprep.subr.mxu0 0.0
        %796 = vmatpush1.msra.mxu0 0.0
        %797 = vmatprep.subr.mxu0 0.0
        %798 = vmatpush1.msra.mxu0 0.0
        %799 = vmatprep.subr.mxu0 0.0
        %800 = vmatpush1.msra.mxu0 0.0
        %801 = vmatprep.subr.mxu0 0.0
        %802 = vmatpush1.msra.mxu0 0.0
        %803 = vmatprep.subr.mxu0 0.0
        %804 = vmatpush1.msra.mxu0 0.0
        %805 = vmatprep.subr.mxu0 0.0
        %806 = vmatpush1.msra.mxu0 0.0
        %807 = vmatprep.subr.mxu0 0.0
        %808 = vmatpush1.msra.mxu0 0.0
        %809 = vmatprep.subr.mxu0 0.0
        %810 = vmatpush1.msra.mxu0 0.0
        %811 = vmatprep.subr.mxu0 0.0
        %812 = vmatpush1.msra.mxu0 0.0
        %813 = vmatprep.subr.mxu0 0.0
        %814 = vmatpush1.msra.mxu0 0.0
        %815 = vmatprep.subr.mxu0 0.0
        %816 = vmatpush1.msra.mxu0 0.0
        %817 = vmatprep.subr.mxu0 0.0
        %818 = vmatpush1.msra.mxu0 0.0
        %819 = vmatprep.subr.mxu0 0.0
        %820 = vmatpush1.msra.mxu0 0.0
        %821 = vmatprep.subr.mxu0 0.0
        %822 = vmatpush1.msra.mxu0 0.0
        %823 = vmatprep.subr.mxu0 0.0
        %824 = vmatpush1.msra.mxu0 0.0
        %825 = vmatprep.subr.mxu0 0.0
        %826 = vmatpush1.msra.mxu0 0.0
        %827 = vmatprep.subr.mxu0 0.0
        %828 = vmatpush1.msra.mxu0 0.0
        %829 = vmatprep.subr.mxu0 0.0
        %830 = vmatpush1.msra.mxu0 0.0
        %831 = vmatprep.subr.mxu0 0.0
        %832 = vmatpush1.msra.mxu0 0.0
        %833 = vmatprep.subr.mxu0 0.0
        %834 = vmatpush1.msra.mxu0 0.0
        %835 = vmatprep.subr.mxu0 0.0
        %836 = vmatpush1.msra.mxu0 0.0
        %837 = vmatprep.subr.mxu0 0.0
        %838 = vmatpush1.msra.mxu0 0.0
        %839 = vmatprep.subr.mxu0 0.0
        %840 = vmatpush1.msra.mxu0 0.0
        %841 = vmatprep.subr.mxu0 0.0
        %842 = vmatpush1.msra.mxu0 0.0
        %843 = vmatprep.subr.mxu0 0.0
        %844 = vmatpush1.msra.mxu0 0.0
        %845 = vmatprep.subr.mxu0 0.0
        %846 = vmatpush1.msra.mxu0 0.0
        %847 = vmatprep.subr.mxu0 0.0
        %848 = vmatpush1.msra.mxu0 0.0
        %849 = vmatprep.mubr.f32.mxu0 0.0
        %850 = vmatmul.mubr.f32.gmra.mrb[0].mxu0 %v780
        %v851 = vpop.f32.mrb[0].mxu0
        %v852 = vadd.f32 0.0, %v851
        %v853 = vpop.f32.mrb[0].mxu0
        %854 = vmatprep.mubr.f32.mxu0 0.0
        %855 = vmatmul.mubr.f32.gmra.mrb[0].mxu0 %v783
        %v856 = vpop.f32.mrb[0].mxu0
        %v857 = vadd.f32 0.0, %v856
        %v858 = vpop.f32.mrb[0].mxu0
        %859 = vdwg.mxu0
        %s860 = scalar_lea.vmem [#allocation5], 16
        %v861 = vld [vmem:[%s860] sm:$0xff]
        %v862 = vld [vmem:[%s860 + $0x8] sm:$0xff]
        %864 = vset.pattern.permute.xlu0 0
        %865 = vperm.xlu0 %864, %v735
        %v866 = vpop.permute.xlu0 %865
        %869 = vset.pattern.permute.xlu0 0
        %870 = vperm.xlu0 %869, %v737
        %v871 = vpop.permute.xlu0 %870
        %v873 = vmul.f32 %v866, %v861
        %v874 = vmul.f32 %v871, %v862
        %v875 = vadd.f32 %v873, %v852
        %v876 = vadd.f32 %v874, %v857
        %877 = vst.msk [vmem:[%s860] sm:$0xff] %vm382, %v875
        %878 = vst.msk [vmem:[%s860 + $0x8] sm:$0xff] %vm382, %v876
        %v879 = vld [vmem:[%s257] sm:$0xff]
        %v880 = vld [vmem:[%s257 + $0x8] sm:$0xff]
        %v881 = vld [vmem:[%s266] sm:$0xff]
        %v882 = vld [vmem:[%s266 + $0x8] sm:$0xff]
        %s883 = scalar_lea.vmem [#allocation2], 32
        %v884 = vld [vmem:[%s883] sm:$0xff]
        %v885 = vld [vmem:[%s883 + $0x8] sm:$0xff]
        %888 = vrot.lane.b32.xlu0 %v879, 64
        %v889 = vpop.permute.xlu0 %888
        %890 = vrot.lane.b32.xlu0 %v880, 64
        %v891 = vpop.permute.xlu0 %890
        %v893 = vsel %vm382, %v884, 0
        %v896 = vsel %vm382, %v885, 0
        %v898 = vsel %vm382, %v889, 0
        %v900 = vsel %vm382, %v891, 0
        %902 = vmatprep.subr.mxu0 0.0
        %903 = vmatpush1.xpose.msra.mxu0 %v898
        %904 = vmatprep.subr.mxu0 0.0
        %905 = vmatpush1.xpose.msra.mxu0 %v900
        %906 = vmatprep.subr.mxu0 0.0
        %907 = vmatpush1.xpose.msra.mxu0 0.0
        %908 = vmatprep.subr.mxu0 0.0
        %909 = vmatpush1.xpose.msra.mxu0 0.0
        %910 = vmatprep.subr.mxu0 0.0
        %911 = vmatpush1.xpose.msra.mxu0 0.0
        %912 = vmatprep.subr.mxu0 0.0
        %913 = vmatpush1.xpose.msra.mxu0 0.0
        %914 = vmatprep.subr.mxu0 0.0
        %915 = vmatpush1.xpose.msra.mxu0 0.0
        %916 = vmatprep.subr.mxu0 0.0
        %917 = vmatpush1.xpose.msra.mxu0 0.0
        %918 = vmatprep.subr.mxu0 0.0
        %919 = vmatpush1.xpose.msra.mxu0 0.0
        %920 = vmatprep.subr.mxu0 0.0
        %921 = vmatpush1.xpose.msra.mxu0 0.0
        %922 = vmatprep.subr.mxu0 0.0
        %923 = vmatpush1.xpose.msra.mxu0 0.0
        %924 = vmatprep.subr.mxu0 0.0
        %925 = vmatpush1.xpose.msra.mxu0 0.0
        %926 = vmatprep.subr.mxu0 0.0
        %927 = vmatpush1.xpose.msra.mxu0 0.0
        %928 = vmatprep.subr.mxu0 0.0
        %929 = vmatpush1.xpose.msra.mxu0 0.0
        %930 = vmatprep.subr.mxu0 0.0
        %931 = vmatpush1.xpose.msra.mxu0 0.0
        %932 = vmatprep.subr.mxu0 0.0
        %933 = vmatpush1.xpose.msra.mxu0 0.0
        %934 = vmatprep.subr.mxu0 0.0
        %935 = vmatpush1.xpose.msra.mxu0 0.0
        %936 = vmatprep.subr.mxu0 0.0
        %937 = vmatpush1.xpose.msra.mxu0 0.0
        %938 = vmatprep.subr.mxu0 0.0
        %939 = vmatpush1.xpose.msra.mxu0 0.0
        %940 = vmatprep.subr.mxu0 0.0
        %941 = vmatpush1.xpose.msra.mxu0 0.0
        %942 = vmatprep.subr.mxu0 0.0
        %943 = vmatpush1.xpose.msra.mxu0 0.0
        %944 = vmatprep.subr.mxu0 0.0
        %945 = vmatpush1.xpose.msra.mxu0 0.0
        %946 = vmatprep.subr.mxu0 0.0
        %947 = vmatpush1.xpose.msra.mxu0 0.0
        %948 = vmatprep.subr.mxu0 0.0
        %949 = vmatpush1.xpose.msra.mxu0 0.0
        %950 = vmatprep.subr.mxu0 0.0
        %951 = vmatpush1.xpose.msra.mxu0 0.0
        %952 = vmatprep.subr.mxu0 0.0
        %953 = vmatpush1.xpose.msra.mxu0 0.0
        %954 = vmatprep.subr.mxu0 0.0
        %955 = vmatpush1.xpose.msra.mxu0 0.0
        %956 = vmatprep.subr.mxu0 0.0
        %957 = vmatpush1.xpose.msra.mxu0 0.0
        %958 = vmatprep.subr.mxu0 0.0
        %959 = vmatpush1.xpose.msra.mxu0 0.0
        %960 = vmatprep.subr.mxu0 0.0
        %961 = vmatpush1.xpose.msra.mxu0 0.0
        %962 = vmatprep.subr.mxu0 0.0
        %963 = vmatpush1.xpose.msra.mxu0 0.0
        %964 = vmatprep.subr.mxu0 0.0
        %965 = vmatpush1.xpose.msra.mxu0 0.0
        %966 = vmatprep.mubr.f32.mxu0 0.0
        %967 = vmatmul.mubr.f32.gmra.mrb[0].mxu0 %v893
        %v968 = vpop.f32.mrb[0].mxu0
        %v969 = vadd.f32 0.0, %v968
        %v970 = vpop.f32.mrb[0].mxu0
        %971 = vmatprep.mubr.f32.mxu0 0.0
        %972 = vmatmul.mubr.f32.gmra.mrb[0].mxu0 %v896
        %v973 = vpop.f32.mrb[0].mxu0
        %v974 = vadd.f32 0.0, %v973
        %v975 = vpop.f32.mrb[0].mxu0
        %976 = vdwg.mxu0
        %v977 = vmul.f32 %v969, 0.17677669
        %v978 = vmul.f32 %v974, 0.17677669
        %s979 = scalar_lea.vmem [#allocation3], 32
        %v980 = vld [vmem:[%s979] sm:$0xff]
        %v981 = vld [vmem:[%s979 + $0x8] sm:$0xff]
        %v982 = vsel %vm474, %v977, -inf
        %983 = vmax.xlane.f32.xlu0 %v982
        %v984 = vpop.xlane.xlu0 %983
        %v985 = vsel %vm474, %v978, -inf
        %986 = vmax.xlane.f32.xlu0 %v985
        %v987 = vpop.xlane.xlu0 %986
        %v988 = vmax.f32 %v980, %v984
        %v989 = vmax.f32 %v981, %v987
        %v990 = vsub.f32 %v980, %v988
        %v991 = vsub.f32 %v981, %v989
        %v992 = vmul.f32 %v990, 1.442695
        %v993 = vpow.pop %v992
        %v994 = vmul.f32 %v991, 1.442695
        %v995 = vpow.pop %v994
        %997 = vset.pattern.permute.xlu0 0
        %998 = vperm.xlu0 %997, %v988
        %v999 = vpop.permute.xlu0 %998
        %1002 = vset.pattern.permute.xlu0 0
        %1003 = vperm.xlu0 %1002, %v989
        %v1004 = vpop.permute.xlu0 %1003
        %v1006 = vsub.f32 %v977, %v999
        %v1007 = vsub.f32 %v978, %v1004
        %v1008 = vmul.f32 %v1006, 1.442695
        %v1009 = vpow.pop %v1008
        %v1010 = vmul.f32 %v1007, 1.442695
        %v1011 = vpow.pop %v1010
        %s1012 = scalar_lea.vmem [#allocation4], 32
        %v1013 = vld [vmem:[%s1012] sm:$0xff]
        %v1014 = vld [vmem:[%s1012 + $0x8] sm:$0xff]
        %v1015 = vmul.f32 %v993, %v1013
        %v1016 = vmul.f32 %v995, %v1014
        %v1017 = vsel %vm474, %v1009, 0.0
        %1018 = vadd.xlane.f32.xlu0 %v1017
        %v1019 = vpop.xlane.xlu0 %1018
        %v1020 = vsel %vm474, %v1011, 0.0
        %1021 = vadd.xlane.f32.xlu0 %v1020
        %v1022 = vpop.xlane.xlu0 %1021
        %v1023 = vadd.f32 %v1015, %v1019
        %v1024 = vadd.f32 %v1016, %v1022
        %1025 = vst.msk [vmem:[%s1012] sm:$0xff] %vm517, %v1023
        %1026 = vst.msk [vmem:[%s1012 + $0x8] sm:$0xff] %vm517, %v1024
        %1027 = vst.msk [vmem:[%s979] sm:$0xff] %vm517, %v988
        %1028 = vst.msk [vmem:[%s979 + $0x8] sm:$0xff] %vm517, %v989
        %1031 = vrot.lane.b32.xlu0 %v881, 64
        %v1032 = vpop.permute.xlu0 %1031
        %1033 = vrot.lane.b32.xlu0 %v882, 64
        %v1034 = vpop.permute.xlu0 %1033
        %v1038 = vsel %vm474, %v1009, 0
        %v1041 = vsel %vm474, %v1011, 0
        %1043 = vmatprep.subr.mxu0 0.0
        %1044 = vmatpush1.msra.mxu0 %v1032
        %1045 = vmatprep.subr.mxu0 0.0
        %1046 = vmatpush1.msra.mxu0 %v1034
        %1047 = vmatprep.subr.mxu0 0.0
        %1048 = vmatpush1.msra.mxu0 0.0
        %1049 = vmatprep.subr.mxu0 0.0
        %1050 = vmatpush1.msra.mxu0 0.0
        %1051 = vmatprep.subr.mxu0 0.0
        %1052 = vmatpush1.msra.mxu0 0.0
        %1053 = vmatprep.subr.mxu0 0.0
        %1054 = vmatpush1.msra.mxu0 0.0
        %1055 = vmatprep.subr.mxu0 0.0
        %1056 = vmatpush1.msra.mxu0 0.0
        %1057 = vmatprep.subr.mxu0 0.0
        %1058 = vmatpush1.msra.mxu0 0.0
        %1059 = vmatprep.subr.mxu0 0.0
        %1060 = vmatpush1.msra.mxu0 0.0
        %1061 = vmatprep.subr.mxu0 0.0
        %1062 = vmatpush1.msra.mxu0 0.0
        %1063 = vmatprep.subr.mxu0 0.0
        %1064 = vmatpush1.msra.mxu0 0.0
        %1065 = vmatprep.subr.mxu0 0.0
        %1066 = vmatpush1.msra.mxu0 0.0
        %1067 = vmatprep.subr.mxu0 0.0
        %1068 = vmatpush1.msra.mxu0 0.0
        %1069 = vmatprep.subr.mxu0 0.0
        %1070 = vmatpush1.msra.mxu0 0.0
        %1071 = vmatprep.subr.mxu0 0.0
        %1072 = vmatpush1.msra.mxu0 0.0
        %1073 = vmatprep.subr.mxu0 0.0
        %1074 = vmatpush1.msra.mxu0 0.0
        %1075 = vmatprep.subr.mxu0 0.0
        %1076 = vmatpush1.msra.mxu0 0.0
        %1077 = vmatprep.subr.mxu0 0.0
        %1078 = vmatpush1.msra.mxu0 0.0
        %1079 = vmatprep.subr.mxu0 0.0
        %1080 = vmatpush1.msra.mxu0 0.0
        %1081 = vmatprep.subr.mxu0 0.0
        %1082 = vmatpush1.msra.mxu0 0.0
        %1083 = vmatprep.subr.mxu0 0.0
        %1084 = vmatpush1.msra.mxu0 0.0
        %1085 = vmatprep.subr.mxu0 0.0
        %1086 = vmatpush1.msra.mxu0 0.0
        %1087 = vmatprep.subr.mxu0 0.0
        %1088 = vmatpush1.msra.mxu0 0.0
        %1089 = vmatprep.subr.mxu0 0.0
        %1090 = vmatpush1.msra.mxu0 0.0
        %1091 = vmatprep.subr.mxu0 0.0
        %1092 = vmatpush1.msra.mxu0 0.0
        %1093 = vmatprep.subr.mxu0 0.0
        %1094 = vmatpush1.msra.mxu0 0.0
        %1095 = vmatprep.subr.mxu0 0.0
        %1096 = vmatpush1.msra.mxu0 0.0
        %1097 = vmatprep.subr.mxu0 0.0
        %1098 = vmatpush1.msra.mxu0 0.0
        %1099 = vmatprep.subr.mxu0 0.0
        %1100 = vmatpush1.msra.mxu0 0.0
        %1101 = vmatprep.subr.mxu0 0.0
        %1102 = vmatpush1.msra.mxu0 0.0
        %1103 = vmatprep.subr.mxu0 0.0
        %1104 = vmatpush1.msra.mxu0 0.0
        %1105 = vmatprep.subr.mxu0 0.0
        %1106 = vmatpush1.msra.mxu0 0.0
        %1107 = vmatprep.mubr.f32.mxu0 0.0
        %1108 = vmatmul.mubr.f32.gmra.mrb[0].mxu0 %v1038
        %v1109 = vpop.f32.mrb[0].mxu0
        %v1110 = vadd.f32 0.0, %v1109
        %v1111 = vpop.f32.mrb[0].mxu0
        %1112 = vmatprep.mubr.f32.mxu0 0.0
        %1113 = vmatmul.mubr.f32.gmra.mrb[0].mxu0 %v1041
        %v1114 = vpop.f32.mrb[0].mxu0
        %v1115 = vadd.f32 0.0, %v1114
        %v1116 = vpop.f32.mrb[0].mxu0
        %1117 = vdwg.mxu0
        %s1118 = scalar_lea.vmem [#allocation5], 32
        %v1119 = vld [vmem:[%s1118] sm:$0xff]
        %v1120 = vld [vmem:[%s1118 + $0x8] sm:$0xff]
        %1122 = vset.pattern.permute.xlu0 0
        %1123 = vperm.xlu0 %1122, %v993
        %v1124 = vpop.permute.xlu0 %1123
        %1127 = vset.pattern.permute.xlu0 0
        %1128 = vperm.xlu0 %1127, %v995
        %v1129 = vpop.permute.xlu0 %1128
        %v1131 = vmul.f32 %v1124, %v1119
        %v1132 = vmul.f32 %v1129, %v1120
        %v1133 = vadd.f32 %v1131, %v1110
        %v1134 = vadd.f32 %v1132, %v1115
        %1135 = vst.msk [vmem:[%s1118] sm:$0xff] %vm382, %v1133
        %1136 = vst.msk [vmem:[%s1118 + $0x8] sm:$0xff] %vm382, %v1134
        %v1137 = vld [vmem:[%s257] sm:$0xff]
        %v1138 = vld [vmem:[%s257 + $0x8] sm:$0xff]
        %v1139 = vld [vmem:[%s266] sm:$0xff]
        %v1140 = vld [vmem:[%s266 + $0x8] sm:$0xff]
        %s1141 = scalar_lea.vmem [#allocation2], 48
        %v1142 = vld [vmem:[%s1141] sm:$0xff]
        %v1143 = vld [vmem:[%s1141 + $0x8] sm:$0xff]
        %1146 = vrot.lane.b32.xlu0 %v1137, 32
        %v1147 = vpop.permute.xlu0 %1146
        %1148 = vrot.lane.b32.xlu0 %v1138, 32
        %v1149 = vpop.permute.xlu0 %1148
        %v1151 = vsel %vm382, %v1142, 0
        %v1154 = vsel %vm382, %v1143, 0
        %v1156 = vsel %vm382, %v1147, 0
        %v1158 = vsel %vm382, %v1149, 0
        %1160 = vmatprep.subr.mxu0 0.0
        %1161 = vmatpush1.xpose.msra.mxu0 %v1156
        %1162 = vmatprep.subr.mxu0 0.0
        %1163 = vmatpush1.xpose.msra.mxu0 %v1158
        %1164 = vmatprep.subr.mxu0 0.0
        %1165 = vmatpush1.xpose.msra.mxu0 0.0
        %1166 = vmatprep.subr.mxu0 0.0
        %1167 = vmatpush1.xpose.msra.mxu0 0.0
        %1168 = vmatprep.subr.mxu0 0.0
        %1169 = vmatpush1.xpose.msra.mxu0 0.0
        %1170 = vmatprep.subr.mxu0 0.0
        %1171 = vmatpush1.xpose.msra.mxu0 0.0
        %1172 = vmatprep.subr.mxu0 0.0
        %1173 = vmatpush1.xpose.msra.mxu0 0.0
        %1174 = vmatprep.subr.mxu0 0.0
        %1175 = vmatpush1.xpose.msra.mxu0 0.0
        %1176 = vmatprep.subr.mxu0 0.0
        %1177 = vmatpush1.xpose.msra.mxu0 0.0
        %1178 = vmatprep.subr.mxu0 0.0
        %1179 = vmatpush1.xpose.msra.mxu0 0.0
        %1180 = vmatprep.subr.mxu0 0.0
        %1181 = vmatpush1.xpose.msra.mxu0 0.0
        %1182 = vmatprep.subr.mxu0 0.0
        %1183 = vmatpush1.xpose.msra.mxu0 0.0
        %1184 = vmatprep.subr.mxu0 0.0
        %1185 = vmatpush1.xpose.msra.mxu0 0.0
        %1186 = vmatprep.subr.mxu0 0.0
        %1187 = vmatpush1.xpose.msra.mxu0 0.0
        %1188 = vmatprep.subr.mxu0 0.0
        %1189 = vmatpush1.xpose.msra.mxu0 0.0
        %1190 = vmatprep.subr.mxu0 0.0
        %1191 = vmatpush1.xpose.msra.mxu0 0.0
        %1192 = vmatprep.subr.mxu0 0.0
        %1193 = vmatpush1.xpose.msra.mxu0 0.0
        %1194 = vmatprep.subr.mxu0 0.0
        %1195 = vmatpush1.xpose.msra.mxu0 0.0
        %1196 = vmatprep.subr.mxu0 0.0
        %1197 = vmatpush1.xpose.msra.mxu0 0.0
        %1198 = vmatprep.subr.mxu0 0.0
        %1199 = vmatpush1.xpose.msra.mxu0 0.0
        %1200 = vmatprep.subr.mxu0 0.0
        %1201 = vmatpush1.xpose.msra.mxu0 0.0
        %1202 = vmatprep.subr.mxu0 0.0
        %1203 = vmatpush1.xpose.msra.mxu0 0.0
        %1204 = vmatprep.subr.mxu0 0.0
        %1205 = vmatpush1.xpose.msra.mxu0 0.0
        %1206 = vmatprep.subr.mxu0 0.0
        %1207 = vmatpush1.xpose.msra.mxu0 0.0
        %1208 = vmatprep.subr.mxu0 0.0
        %1209 = vmatpush1.xpose.msra.mxu0 0.0
        %1210 = vmatprep.subr.mxu0 0.0
        %1211 = vmatpush1.xpose.msra.mxu0 0.0
        %1212 = vmatprep.subr.mxu0 0.0
        %1213 = vmatpush1.xpose.msra.mxu0 0.0
        %1214 = vmatprep.subr.mxu0 0.0
        %1215 = vmatpush1.xpose.msra.mxu0 0.0
        %1216 = vmatprep.subr.mxu0 0.0
        %1217 = vmatpush1.xpose.msra.mxu0 0.0
        %1218 = vmatprep.subr.mxu0 0.0
        %1219 = vmatpush1.xpose.msra.mxu0 0.0
        %1220 = vmatprep.subr.mxu0 0.0
        %1221 = vmatpush1.xpose.msra.mxu0 0.0
        %1222 = vmatprep.subr.mxu0 0.0
        %1223 = vmatpush1.xpose.msra.mxu0 0.0
        %1224 = vmatprep.mubr.f32.mxu0 0.0
        %1225 = vmatmul.mubr.f32.gmra.mrb[0].mxu0 %v1151
        %v1226 = vpop.f32.mrb[0].mxu0
        %v1227 = vadd.f32 0.0, %v1226
        %v1228 = vpop.f32.mrb[0].mxu0
        %1229 = vmatprep.mubr.f32.mxu0 0.0
        %1230 = vmatmul.mubr.f32.gmra.mrb[0].mxu0 %v1154
        %v1231 = vpop.f32.mrb[0].mxu0
        %v1232 = vadd.f32 0.0, %v1231
        %v1233 = vpop.f32.mrb[0].mxu0
        %1234 = vdwg.mxu0
        %v1235 = vmul.f32 %v1227, 0.17677669
        %v1236 = vmul.f32 %v1232, 0.17677669
        %s1237 = scalar_lea.vmem [#allocation3], 48
        %v1238 = vld [vmem:[%s1237] sm:$0xff]
        %v1239 = vld [vmem:[%s1237 + $0x8] sm:$0xff]
        %v1240 = vsel %vm474, %v1235, -inf
        %1241 = vmax.xlane.f32.xlu0 %v1240
        %v1242 = vpop.xlane.xlu0 %1241
        %v1243 = vsel %vm474, %v1236, -inf
        %1244 = vmax.xlane.f32.xlu0 %v1243
        %v1245 = vpop.xlane.xlu0 %1244
        %v1246 = vmax.f32 %v1238, %v1242
        %v1247 = vmax.f32 %v1239, %v1245
        %v1248 = vsub.f32 %v1238, %v1246
        %v1249 = vsub.f32 %v1239, %v1247
        %v1250 = vmul.f32 %v1248, 1.442695
        %v1251 = vpow.pop %v1250
        %v1252 = vmul.f32 %v1249, 1.442695
        %v1253 = vpow.pop %v1252
        %1255 = vset.pattern.permute.xlu0 0
        %1256 = vperm.xlu0 %1255, %v1246
        %v1257 = vpop.permute.xlu0 %1256
        %1260 = vset.pattern.permute.xlu0 0
        %1261 = vperm.xlu0 %1260, %v1247
        %v1262 = vpop.permute.xlu0 %1261
        %v1264 = vsub.f32 %v1235, %v1257
        %v1265 = vsub.f32 %v1236, %v1262
        %v1266 = vmul.f32 %v1264, 1.442695
        %v1267 = vpow.pop %v1266
        %v1268 = vmul.f32 %v1265, 1.442695
        %v1269 = vpow.pop %v1268
        %s1270 = scalar_lea.vmem [#allocation4], 48
        %v1271 = vld [vmem:[%s1270] sm:$0xff]
        %v1272 = vld [vmem:[%s1270 + $0x8] sm:$0xff]
        %v1273 = vmul.f32 %v1251, %v1271
        %v1274 = vmul.f32 %v1253, %v1272
        %v1275 = vsel %vm474, %v1267, 0.0
        %1276 = vadd.xlane.f32.xlu0 %v1275
        %v1277 = vpop.xlane.xlu0 %1276
        %v1278 = vsel %vm474, %v1269, 0.0
        %1279 = vadd.xlane.f32.xlu0 %v1278
        %v1280 = vpop.xlane.xlu0 %1279
        %v1281 = vadd.f32 %v1273, %v1277
        %v1282 = vadd.f32 %v1274, %v1280
        %1283 = vst.msk [vmem:[%s1270] sm:$0xff] %vm517, %v1281
        %1284 = vst.msk [vmem:[%s1270 + $0x8] sm:$0xff] %vm517, %v1282
        %1285 = vst.msk [vmem:[%s1237] sm:$0xff] %vm517, %v1246
        %1286 = vst.msk [vmem:[%s1237 + $0x8] sm:$0xff] %vm517, %v1247
        %1289 = vrot.lane.b32.xlu0 %v1139, 32
        %v1290 = vpop.permute.xlu0 %1289
        %1291 = vrot.lane.b32.xlu0 %v1140, 32
        %v1292 = vpop.permute.xlu0 %1291
        %v1296 = vsel %vm474, %v1267, 0
        %v1299 = vsel %vm474, %v1269, 0
        %1301 = vmatprep.subr.mxu0 0.0
        %1302 = vmatpush1.msra.mxu0 %v1290
        %1303 = vmatprep.subr.mxu0 0.0
        %1304 = vmatpush1.msra.mxu0 %v1292
        %1305 = vmatprep.subr.mxu0 0.0
        %1306 = vmatpush1.msra.mxu0 0.0
        %1307 = vmatprep.subr.mxu0 0.0
        %1308 = vmatpush1.msra.mxu0 0.0
        %1309 = vmatprep.subr.mxu0 0.0
        %1310 = vmatpush1.msra.mxu0 0.0
        %1311 = vmatprep.subr.mxu0 0.0
        %1312 = vmatpush1.msra.mxu0 0.0
        %1313 = vmatprep.subr.mxu0 0.0
        %1314 = vmatpush1.msra.mxu0 0.0
        %1315 = vmatprep.subr.mxu0 0.0
        %1316 = vmatpush1.msra.mxu0 0.0
        %1317 = vmatprep.subr.mxu0 0.0
        %1318 = vmatpush1.msra.mxu0 0.0
        %1319 = vmatprep.subr.mxu0 0.0
        %1320 = vmatpush1.msra.mxu0 0.0
        %1321 = vmatprep.subr.mxu0 0.0
        %1322 = vmatpush1.msra.mxu0 0.0
        %1323 = vmatprep.subr.mxu0 0.0
        %1324 = vmatpush1.msra.mxu0 0.0
        %1325 = vmatprep.subr.mxu0 0.0
        %1326 = vmatpush1.msra.mxu0 0.0
        %1327 = vmatprep.subr.mxu0 0.0
        %1328 = vmatpush1.msra.mxu0 0.0
        %1329 = vmatprep.subr.mxu0 0.0
        %1330 = vmatpush1.msra.mxu0 0.0
        %1331 = vmatprep.subr.mxu0 0.0
        %1332 = vmatpush1.msra.mxu0 0.0
        %1333 = vmatprep.subr.mxu0 0.0
        %1334 = vmatpush1.msra.mxu0 0.0
        %1335 = vmatprep.subr.mxu0 0.0
        %1336 = vmatpush1.msra.mxu0 0.0
        %1337 = vmatprep.subr.mxu0 0.0
        %1338 = vmatpush1.msra.mxu0 0.0
        %1339 = vmatprep.subr.mxu0 0.0
        %1340 = vmatpush1.msra.mxu0 0.0
        %1341 = vmatprep.subr.mxu0 0.0
        %1342 = vmatpush1.msra.mxu0 0.0
        %1343 = vmatprep.subr.mxu0 0.0
        %1344 = vmatpush1.msra.mxu0 0.0
        %1345 = vmatprep.subr.mxu0 0.0
        %1346 = vmatpush1.msra.mxu0 0.0
        %1347 = vmatprep.subr.mxu0 0.0
        %1348 = vmatpush1.msra.mxu0 0.0
        %1349 = vmatprep.subr.mxu0 0.0
        %1350 = vmatpush1.msra.mxu0 0.0
        %1351 = vmatprep.subr.mxu0 0.0
        %1352 = vmatpush1.msra.mxu0 0.0
        %1353 = vmatprep.subr.mxu0 0.0
        %1354 = vmatpush1.msra.mxu0 0.0
        %1355 = vmatprep.subr.mxu0 0.0
        %1356 = vmatpush1.msra.mxu0 0.0
        %1357 = vmatprep.subr.mxu0 0.0
        %1358 = vmatpush1.msra.mxu0 0.0
        %1359 = vmatprep.subr.mxu0 0.0
        %1360 = vmatpush1.msra.mxu0 0.0
        %1361 = vmatprep.subr.mxu0 0.0
        %1362 = vmatpush1.msra.mxu0 0.0
        %1363 = vmatprep.subr.mxu0 0.0
        %1364 = vmatpush1.msra.mxu0 0.0
        %1365 = vmatprep.mubr.f32.mxu0 0.0
        %1366 = vmatmul.mubr.f32.gmra.mrb[0].mxu0 %v1296
        %v1367 = vpop.f32.mrb[0].mxu0
        %v1368 = vadd.f32 0.0, %v1367
        %v1369 = vpop.f32.mrb[0].mxu0
        %1370 = vmatprep.mubr.f32.mxu0 0.0
        %1371 = vmatmul.mubr.f32.gmra.mrb[0].mxu0 %v1299
        %v1372 = vpop.f32.mrb[0].mxu0
        %v1373 = vadd.f32 0.0, %v1372
        %v1374 = vpop.f32.mrb[0].mxu0
        %1375 = vdwg.mxu0
        %s1376 = scalar_lea.vmem [#allocation5], 48
        %v1377 = vld [vmem:[%s1376] sm:$0xff]
        %v1378 = vld [vmem:[%s1376 + $0x8] sm:$0xff]
        %1380 = vset.pattern.permute.xlu0 0
        %1381 = vperm.xlu0 %1380, %v1251
        %v1382 = vpop.permute.xlu0 %1381
        %1385 = vset.pattern.permute.xlu0 0
        %1386 = vperm.xlu0 %1385, %v1253
        %v1387 = vpop.permute.xlu0 %1386
        %v1389 = vmul.f32 %v1382, %v1377
        %v1390 = vmul.f32 %v1387, %v1378
        %v1391 = vadd.f32 %v1389, %v1368
        %v1392 = vadd.f32 %v1390, %v1373
        %1393 = vst.msk [vmem:[%s1376] sm:$0xff] %vm382, %v1391
        %1394 = vst.msk [vmem:[%s1376 + $0x8] sm:$0xff] %vm382, %v1392
        // Predicated region
        $region49: #{tpu_custom_call.1} parent=31 // pred_check
          %p1395 = pneg %p303
        $region50: #{tpu_custom_call.1} parent=31 // pred_check_branch
          %1397 = sbr.rel (%p1395) target = $region52
        $region51: #{tpu_custom_call.1} parent=31 // pred_region
          %v1398 = vld [vmem:[#allocation4] sm:$0xff]
          %v1399 = vld [vmem:[#allocation4 + $0x8] sm:$0xff]
          %v1400 = vrcp.pop %v1398
          %v1401 = vrcp.pop %v1399
          %v1402 = vld [vmem:[#allocation5] sm:$0xff]
          %v1403 = vld [vmem:[#allocation5 + $0x8] sm:$0xff]
          %1405 = vset.pattern.permute.xlu0 0
          %1406 = vperm.xlu0 %1405, %v1400
          %v1407 = vpop.permute.xlu0 %1406
          %1410 = vset.pattern.permute.xlu0 0
          %1411 = vperm.xlu0 %1410, %v1401
          %v1412 = vpop.permute.xlu0 %1411
          %v1414 = vmul.f32 %v1402, %v1407
          %v1415 = vmul.f32 %v1403, %v1412
          %1416 = vst.msk [vmem:[%s298] sm:$0xff] %vm382, %v1414
          %1417 = vst.msk [vmem:[%s298 + $0x8] sm:$0xff] %vm382, %v1415
          %v1418 = vld [vmem:[%s754] sm:$0xff]
          %v1419 = vld [vmem:[%s754 + $0x8] sm:$0xff]
          %v1420 = vrcp.pop %v1418
          %v1421 = vrcp.pop %v1419
          %v1422 = vld [vmem:[%s860] sm:$0xff]
          %v1423 = vld [vmem:[%s860 + $0x8] sm:$0xff]
          %1425 = vset.pattern.permute.xlu0 0
          %1426 = vperm.xlu0 %1425, %v1420
          %v1427 = vpop.permute.xlu0 %1426
          %1430 = vset.pattern.permute.xlu0 0
          %1431 = vperm.xlu0 %1430, %v1421
          %v1432 = vpop.permute.xlu0 %1431
          %v1434 = vmul.f32 %v1422, %v1427
          %v1435 = vmul.f32 %v1423, %v1432
          %1438 = vrot.lane.b32.xlu0 %v1434, 32
          %v1439 = vpop.permute.xlu0 %1438
          %1440 = vrot.lane.b32.xlu0 %v1435, 32
          %v1441 = vpop.permute.xlu0 %1440
          %vm1444 = vcmask 523520
          %1445 = vst.msk [vmem:[%s298] sm:$0xff] %vm1444, %v1439
          %1446 = vst.msk [vmem:[%s298 + $0x8] sm:$0xff] %vm1444, %v1441
          %v1447 = vld [vmem:[%s1012] sm:$0xff]
          %v1448 = vld [vmem:[%s1012 + $0x8] sm:$0xff]
          %v1449 = vrcp.pop %v1447
          %v1450 = vrcp.pop %v1448
          %v1451 = vld [vmem:[%s1118] sm:$0xff]
          %v1452 = vld [vmem:[%s1118 + $0x8] sm:$0xff]
          %1454 = vset.pattern.permute.xlu0 0
          %1455 = vperm.xlu0 %1454, %v1449
          %v1456 = vpop.permute.xlu0 %1455
          %1459 = vset.pattern.permute.xlu0 0
          %1460 = vperm.xlu0 %1459, %v1450
          %v1461 = vpop.permute.xlu0 %1460
          %v1463 = vmul.f32 %v1451, %v1456
          %v1464 = vmul.f32 %v1452, %v1461
          %1467 = vrot.lane.b32.xlu0 %v1463, 64
          %v1468 = vpop.permute.xlu0 %1467
          %1469 = vrot.lane.b32.xlu0 %v1464, 64
          %v1470 = vpop.permute.xlu0 %1469
          %vm1473 = vcmask 785920
          %1474 = vst.msk [vmem:[%s298] sm:$0xff] %vm1473, %v1468
          %1475 = vst.msk [vmem:[%s298 + $0x8] sm:$0xff] %vm1473, %v1470
          %v1476 = vld [vmem:[%s1270] sm:$0xff]
          %v1477 = vld [vmem:[%s1270 + $0x8] sm:$0xff]
          %v1478 = vrcp.pop %v1476
          %v1479 = vrcp.pop %v1477
          %v1480 = vld [vmem:[%s1376] sm:$0xff]
          %v1481 = vld [vmem:[%s1376 + $0x8] sm:$0xff]
          %1483 = vset.pattern.permute.xlu0 0
          %1484 = vperm.xlu0 %1483, %v1478
          %v1485 = vpop.permute.xlu0 %1484
          %1488 = vset.pattern.permute.xlu0 0
          %1489 = vperm.xlu0 %1488, %v1479
          %v1490 = vpop.permute.xlu0 %1489
          %v1492 = vmul.f32 %v1480, %v1485
          %v1493 = vmul.f32 %v1481, %v1490
          %1496 = vrot.lane.b32.xlu0 %v1492, 96
          %v1497 = vpop.permute.xlu0 %1496
          %1498 = vrot.lane.b32.xlu0 %v1493, 96
          %v1499 = vpop.permute.xlu0 %1498
          %vm1502 = vcmask 1048320
          %1503 = vst.msk [vmem:[%s298] sm:$0xff] %vm1502, %v1497
          %1504 = vst.msk [vmem:[%s298 + $0x8] sm:$0xff] %vm1502, %v1499
        $region52: #{tpu_custom_call.1} parent=31 // pred_fallthru
          _
        %s1505 = sand.u32 %s136, 1
        %s1506 = scalar_lea.sflag [#allocation8], %s1505
        %s1507 = sand.u32 %s136, 1
        %s1508 = smul.addr %s1507, 16
        %s1509 = scalar_lea.vmem [#allocation12], %s1508
        // Predicated region
        $region53: #{tpu_custom_call.1} parent=31 // pred_check
          %p1510 = pneg %p146
        $region54: #{tpu_custom_call.1} parent=31 // pred_check_branch
          %1512 = sbr.rel (%p1510) target = $region56
        $region55: #{tpu_custom_call.1} parent=31 // pred_region
          %s1513 = smul.u32 2, %s29
          %s1515 = ssub.s32 256, 256
          %1516 = vsyncadd %s1506, %s1515
          %s1517 = smul.addr %s28, 2
          %s1518 = sadd.s32 %s1513, %s1517
          %s1519 = smul.addr %s1518, 128
          %s1520 = scalar_lea.hbm %s3, %s1519
          %s1521 = sshll.u32 %s1509, 4
          %s1522 = int_to_ptr.vmem [resolvable:$true] %s1521
          %1527 = dma.vmem_to_hbm [thread:$0]  %s1522, 256, %s1520, %s1506, 128, 128, 8
        $region56: #{tpu_custom_call.1} parent=31 // pred_fallthru
          _
      $region32: #{tpu_custom_call.1} parent=5 // pred_fallthru
        _
      %p1528 = scmp.le.s32.totalorder 2, %s18
      // Predicated region
      $region57: #{tpu_custom_call.1} parent=5 // pred_check
        %p1529 = pneg %p1528
      $region58: #{tpu_custom_call.1} parent=5 // pred_check_branch
        %1531 = sbr.rel (%p1529) target = $region60
      $region59: #{tpu_custom_call.1} parent=5 // pred_region
        %s1532 = ssub.s32 %s18, 2
        // Predicated region
        $region61: #{tpu_custom_call.1} parent=59 // pred_check
          %p1533 = pneg %p152
        $region62: #{tpu_custom_call.1} parent=59 // pred_check_branch
          %1535 = sbr.rel (%p1533) target = $region64
        $region63: #{tpu_custom_call.1} parent=59 // pred_region
          %s1536 = sand.u32 %s137, 1
          %s1537 = scalar_lea.sflag [#allocation8], %s1536
          %s1538 = sand.u32 %s137, 1
          %s1539 = smul.addr %s1538, 16
          %s1540 = scalar_lea.vmem [#allocation12], %s1539
          %1541 = dma.done %s1537, 256
        $region64: #{tpu_custom_call.1} parent=59 // pred_fallthru
          _
      $region60: #{tpu_custom_call.1} parent=5 // pred_fallthru
        _
    $region6: #{tpu_custom_call.1} parent=1 // loop_footer
      %s22 = sadd.s32 1, %s18
    $region7: #{tpu_custom_call.1} parent=1 // loop_footer_branch
      %17 = sbr.rel target = $region3
    $region8: #{tpu_custom_call.1} parent=1 // loop_exit
      _
    %1542 = vsyncpa [#allocation7], 1
    %s1543 = scalar_lea.sflag [#allocation7], 1
    %1544 = vsyncpa %s1543, 1
    %1545 = vsyncpa [#allocation10], 1
    %s1546 = scalar_lea.sflag [#allocation10], 1
    %1547 = vsyncpa %s1546, 1
    %1548 = vsyncpa [#allocation8], 1
    %s1549 = scalar_lea.sflag [#allocation8], 1
    %1550 = vsyncpa %s1549, 1

</llo_original>
